<compile_context>
chip_gen: v7x
topology: tpu7x:2x2x1
jax: 0.10.0
libtpu: 0.0.40
codegen_flags: <defaults>
</compile_context>

<pallas_src>
import functools

import jax
import jax.numpy as jnp
import numpy as np
from jax.experimental import pallas as pl
from jax.experimental.pallas import tpu as pltpu


def _round_up(v, m):
    return -(-v // m) * m


def _conv_meanpool_kernel(x_ref, w_ref, b_ref, o_ref, *, Q, Ho, Wo, Bblk, C4,
                          single_matmul):
    """Fused stride-2 conv (== stride-1 conv followed by 2x2 mean-pool), one batch block.

    x_ref: (Bblk, Hp2, Wp2, C4)    parity-deinterleaved zero-padded input (bf16),
                                   C4 = 4*Cin, last dim laid out as (rh, rw, ci).
    w_ref: (Q*Q*C4, Cout_pad)      pool-absorbed conv weight in im2col layout (bf16).
    b_ref: (1, Cout_pad)           bias, zero-padded to the lane width (f32).
    o_ref: (Bblk*Ho*Wo, Cout_pad)  flat, lane-dense output rows for this batch block.
    """
    M = Bblk * Ho * Wo
    # Every tap group is a contiguous spatial window of the deinterleaved block.
    patches = [x_ref[:, qh:qh + Ho, qw:qw + Wo, :]            # (Bblk, Ho, Wo, C4)
               for qh in range(Q) for qw in range(Q)]
    if single_matmul:
        # im2col: concatenate the Q*Q groups along the channel axis and do ONE MXU
        # matmul with contraction dim Q*Q*C4 = (K+1)^2*Cin (f32 accumulation).
        lhs = jnp.concatenate(patches, axis=-1).reshape(M, Q * Q * C4)
        acc = jnp.dot(lhs, w_ref[...], preferred_element_type=jnp.float32)
    else:
        # Fallback (older Mosaic without unaligned minor-dim concatenation): Q*Q
        # matmuls over the same contiguous slices, contraction dim C4 = 4*Cin each.
        parts = [jnp.dot(p.reshape(M, C4), w_ref[g * C4:(g + 1) * C4, :],
                         preferred_element_type=jnp.float32)
                 for g, p in enumerate(patches)]
        acc = functools.reduce(lambda a, b: a + b, parts)
    # Bias once, after pooling (mean-pooling a constant is the identity).
    o_ref[...] = (acc + b_ref[...]).astype(o_ref.dtype)


def _vmem_capacity_bytes():
    try:
        return int(pltpu.get_tpu_info().vmem_capacity_bytes)
    except Exception:
        return 64 * 1024 * 1024   # assume the smallest generation (v7x) if unknown


def _pick_batch_block(B, Ho, Wo, est_bytes, budget_bytes, target_rows):
    """Largest divisor of B whose per-step VMEM footprint fits the budget.

    Prefers >= 2 grid steps (so a 2-TensorCore part can split the 'parallel' axis),
    keeps the output block sublane-aligned, and stops growing once M = Bblk*Ho*Wo
    reaches target_rows on an MXU-friendly multiple of 256.
    """
    divisors = [d for d in range(1, B + 1) if B % d == 0]
    aligned = [d for d in divisors if (d * Ho * Wo) % 8 == 0 or d == B]
    preferred = [d for d in aligned if d <= max(1, B // 2)] or aligned
    best = None
    for d in preferred:
        if est_bytes(d) > budget_bytes:
            break
        best = d
        m = d * Ho * Wo
        if m >= target_rows and m % 256 == 0:
            break
    if best is None:
        best = aligned[0]
        # TODO(synk): add spatial (H/W) blocking for images whose single-batch block
        # exceeds the VMEM budget.
        assert est_bytes(best) <= budget_bytes, "input too large for batch-only blocking"
    return best


def conv_mean_pool(x_nchw, w_hwio, bias, *, block_b=None):
    """ConvMeanPool forward. x_nchw: (B, Cin, H, W) -> (B, Cout, H//2, W//2)."""
    B, Cin, H, W = x_nchw.shape
    K = int(w_hwio.shape[0])
    Cout = int(w_hwio.shape[-1])
    assert w_hwio.shape == (K, K, Cin, Cout), w_hwio.shape
    assert K % 2 == 1, "k_size must be odd for 'same' padding"
    assert H % 2 == 0 and W % 2 == 0, "H and W must be even for the 2x2 mean-pool"

    p = (K - 1) // 2
    Ho, Wo = H // 2, W // 2
    Hp, Wp = H + 2 * p, W + 2 * p             # even, since H/W even and K odd
    Hp2, Wp2 = Hp // 2, Wp // 2
    Q = (K + 1) // 2
    C4 = 4 * Cin
    Kdim = Q * Q * C4                          # = (K+1)^2 * Cin  (im2col contraction dim)
    Cout_pad = _round_up(Cout, 128)            # lane-dense output / filled MXU N dim

    # ---- wrapper-side data prep (plain JAX glue at the boundary) ----
    # NCHW -> NHWC, single bf16 cast (accumulation stays f32 in the MXU), zero padding.
    x = jnp.transpose(x_nchw, (0, 2, 3, 1)).astype(jnp.bfloat16)
    xpad = jnp.pad(x, ((0, 0), (p, p), (p, p), (0, 0)))
    # Space-to-depth deinterleave: fold the 2x2 stride parity into the channel axis so
    # every tap in the kernel is a contiguous slice with a 4*Cin-wide lane dim.
    xd = xpad.reshape(B, Hp2, 2, Wp2, 2, Cin)
    xd = jnp.transpose(xd, (0, 1, 3, 2, 4, 5)).reshape(B, Hp2, Wp2, C4)

    # Fuse the 2x2 mean-pool into the conv: stride-2 conv with a (K+1)x(K+1) kernel
    # equal to the average of the four 2x2-shifted copies of w (built at trace time).
    w32 = w_hwio.astype(jnp.float32)
    wf = jnp.zeros((K + 1, K + 1, Cin, Cout), jnp.float32)
    for dh in (0, 1):
        for dw in (0, 1):
            wf = wf.at[dh:dh + K, dw:dw + K, :, :].add(w32)
    wf = wf * 0.25
    # Reorder to the kernel's im2col layout: rows = (qh, qw, rh, rw, ci), matching the
    # parity-in-channels input layout and the tap-group concatenation order.
    w_r = wf.reshape(Q, 2, Q, 2, Cin, Cout).transpose(0, 2, 1, 3, 4, 5)
    w_r = w_r.reshape(Kdim, Cout)
    w_r = jnp.pad(w_r, ((0, 0), (0, Cout_pad - Cout))).astype(jnp.bfloat16)
    b2 = jnp.pad(bias.astype(jnp.float32), (0, Cout_pad - Cout)).reshape(1, Cout_pad)

    # ---- VMEM-aware batch-block sizing ----
    vmem_cap = _vmem_capacity_bytes()
    vmem_limit = (vmem_cap * 3) // 4           # 48 MiB on v7x, 96 MiB on v5e/v6e
    budget = (vmem_limit * 3) // 4             # headroom for Mosaic internal scratch

    def est_bytes(bblk):
        m = bblk * Ho * Wo
        # bf16 input tile: lane dim padded to 128, second-minor to the bf16 sublane tile.
        in_blk = bblk * Hp2 * _round_up(Wp2, 16) * _round_up(C4, 128) * 2
        out_blk = _round_up(m, 8) * Cout_pad * 4                          # f32 output tile
        w_blk = _round_up(Kdim, 16) * Cout_pad * 2 + 8 * Cout_pad * 4     # weight + bias
        # in-kernel temporaries: bf16 im2col lhs + f32 matmul result
        tmp = _round_up(m, 16) * _round_up(Kdim, 128) * 2 + _round_up(m, 8) * Cout_pad * 4
        return 2 * (in_blk + out_blk + w_blk) + tmp   # x2: double-buffered pipeline

    target_rows = 2048 if vmem_cap >= 128 * 1024 * 1024 else 1024
    if block_b is None:
        block_b = _pick_batch_block(B, Ho, Wo, est_bytes, budget, target_rows)
    assert B % block_b == 0
    assert (block_b * Ho * Wo) % 8 == 0 or block_b == B
    Bblk = block_b
    M = Bblk * Ho * Wo

    def run(single_matmul):
        kernel = functools.partial(
            _conv_meanpool_kernel, Q=Q, Ho=Ho, Wo=Wo, Bblk=Bblk, C4=C4,
            single_matmul=single_matmul)
        return pl.pallas_call(
            kernel,
            out_shape=jax.ShapeDtypeStruct((B * Ho * Wo, Cout_pad), x_nchw.dtype),
            grid_spec=pltpu.PrefetchScalarGridSpec(
                num_scalar_prefetch=0,
                grid=(B // Bblk,),
                in_specs=[
                    pl.BlockSpec((Bblk, Hp2, Wp2, C4), lambda i: (i, 0, 0, 0)),
                    pl.BlockSpec((Kdim, Cout_pad), lambda i: (0, 0)),
                    pl.BlockSpec((1, Cout_pad), lambda i: (0, 0)),
                ],
                out_specs=pl.BlockSpec((M, Cout_pad), lambda i: (i, 0)),
            ),
            compiler_params=pltpu.CompilerParams(
                dimension_semantics=("parallel",),
                vmem_limit_bytes=vmem_limit,
            ),
        )(xd, w_r, b2)

    try:
        out_flat = jax.block_until_ready(run(single_matmul=True))
    except Exception:
        # Older Mosaic builds may not lower unaligned minor-dim concatenation; the
        # grouped-matmul path uses only contiguous slices and always lowers.
        out_flat = jax.block_until_ready(run(single_matmul=False))

    out = out_flat[:, :Cout].reshape(B, Ho, Wo, Cout)
    # NHWC -> NCHW to match the PyTorch module's output convention.
    return jnp.transpose(out, (0, 3, 1, 2))


def _reference(x_nchw, w_hwio, bias):
    p = (w_hwio.shape[0] - 1) // 2
    x = jnp.transpose(x_nchw, (0, 2, 3, 1)).astype(jnp.float32)
    y = jax.lax.conv_general_dilated(
        x,
        w_hwio.astype(jnp.float32),
        window_strides=(1, 1),
        padding=((p, p), (p, p)),
        dimension_numbers=("NHWC", "HWIO", "NHWC"),
    )
    y = y + bias.astype(jnp.float32)
    y = (
        y[:, ::2, ::2, :]
        + y[:, 1::2, ::2, :]
        + y[:, ::2, 1::2, :]
        + y[:, 1::2, 1::2, :]
    ) / 4.0
    return jnp.transpose(y, (0, 3, 1, 2))


if __name__ == "__main__":
    # ConvMeanPool(n_input=4, n_output=8, k_size=3) -- conv2/conv_shortcut of
    # ResidualBlock(resample='down').
    B, Cin, H, W = 2, 4, 16, 16
    Cout, K = 8, 3

    key = jax.random.PRNGKey(0)
    kx, kw, kb = jax.random.split(key, 3)
    x = jax.random.normal(kx, (B, Cin, H, W), dtype=jnp.float32)
    # deterministic synthetic parameters (HWIO layout for the kernel)
    w = jax.random.normal(kw, (K, K, Cin, Cout), dtype=jnp.float32) * 0.1
    b = jax.random.normal(kb, (Cout,), dtype=jnp.float32) * 0.1

    out = jax.block_until_ready(conv_mean_pool(x, w, b))
    ref = jax.block_until_ready(_reference(x, w, b))

    assert out.shape == (B, Cout, H // 2, W // 2), out.shape
    # bf16 MXU operands (f32 accumulation) -> bf16-level tolerance vs the f32 reference.
    np.testing.assert_allclose(np.asarray(out), np.asarray(ref), rtol=2e-2, atol=2e-2)
    print("KERNEL_OK")
</pallas_src>

<mosaic_0001>
module attributes {stable_mosaic.version = 11 : i64} {
  func.func @_conv_meanpool_kernel(%arg0: i32, %arg1: memref<1x9x9x16xbf16, #tpu.memory_space<vmem>>, %arg2: memref<64x128xbf16, #tpu.memory_space<vmem>>, %arg3: memref<1x128xf32, #tpu.memory_space<vmem>>, %arg4: memref<64x128xf32, #tpu.memory_space<vmem>>) attributes {dimension_semantics = [#tpu.dimension_semantics<parallel>], iteration_bounds = array<i64: 2>, scalar_prefetch = 0 : i64, scratch_operands = 0 : i64, tpu.core_type = #tpu.core_type<tc>, window_params = [{transform_indices = @transform_0, window_bounds = array<i64: 1, 9, 9, 16>}, {pipeline_mode = #tpu.pipeline_mode<synchronous>, transform_indices = @transform_1, window_bounds = array<i64: 64, 128>}, {pipeline_mode = #tpu.pipeline_mode<synchronous>, transform_indices = @transform_2, window_bounds = array<i64: 1, 128>}, {transform_indices = @transform_3, window_bounds = array<i64: 64, 128>}]} {
    %c0 = arith.constant 0 : index
    %c0_0 = arith.constant 0 : index
    %c0_1 = arith.constant 0 : index
    %c0_2 = arith.constant 0 : index
    %0 = vector.load %arg1[%c0, %c0_0, %c0_1, %c0_2] : memref<1x9x9x16xbf16, #tpu.memory_space<vmem>>, vector<1x8x8x16xbf16>
    %c0_3 = arith.constant 0 : index
    %c0_4 = arith.constant 0 : index
    %c1 = arith.constant 1 : index
    %c0_5 = arith.constant 0 : index
    %1 = vector.load %arg1[%c0_3, %c0_4, %c1, %c0_5] : memref<1x9x9x16xbf16, #tpu.memory_space<vmem>>, vector<1x8x8x16xbf16>
    %c0_6 = arith.constant 0 : index
    %c1_7 = arith.constant 1 : index
    %c0_8 = arith.constant 0 : index
    %c0_9 = arith.constant 0 : index
    %2 = vector.load %arg1[%c0_6, %c1_7, %c0_8, %c0_9] : memref<1x9x9x16xbf16, #tpu.memory_space<vmem>>, vector<1x8x8x16xbf16>
    %c0_10 = arith.constant 0 : index
    %c1_11 = arith.constant 1 : index
    %c1_12 = arith.constant 1 : index
    %c0_13 = arith.constant 0 : index
    %3 = vector.load %arg1[%c0_10, %c1_11, %c1_12, %c0_13] : memref<1x9x9x16xbf16, #tpu.memory_space<vmem>>, vector<1x8x8x16xbf16>
    %4 = tpu.concatenate %0, %1, %2, %3 in 3 : vector<1x8x8x16xbf16>, vector<1x8x8x16xbf16>, vector<1x8x8x16xbf16>, vector<1x8x8x16xbf16> -> vector<1x8x8x64xbf16>
    %5 = vector.shape_cast %4 : vector<1x8x8x64xbf16> to vector<64x64xbf16>
    %c0_14 = arith.constant 0 : index
    %c0_15 = arith.constant 0 : index
    %6 = vector.load %arg2[%c0_14, %c0_15] : memref<64x128xbf16, #tpu.memory_space<vmem>>, vector<64x128xbf16>
    %cst = arith.constant dense<0.000000e+00> : vector<64x128xf32>
    %7 = tpu.matmul %5, %6, %cst {dimension_numbers = #tpu.dot_dimension_numbers<[1], [0], [0], [1], [0, 0, 1, 1], [], []>} : vector<64x64xbf16>, vector<64x128xbf16>, vector<64x128xf32> -> vector<64x128xf32>
    %c0_16 = arith.constant 0 : index
    %c0_17 = arith.constant 0 : index
    %8 = vector.load %arg3[%c0_16, %c0_17] : memref<1x128xf32, #tpu.memory_space<vmem>>, vector<1x128xf32>
    %9 = vector.broadcast %8 : vector<1x128xf32> to vector<64x128xf32>
    %10 = arith.addf %7, %9 : vector<64x128xf32>
    %c0_18 = arith.constant 0 : index
    %c0_19 = arith.constant 0 : index
    %11 = vector.load %arg4[%c0_18, %c0_19] : memref<64x128xf32, #tpu.memory_space<vmem>>, vector<64x128xf32>
    tpu.vector_store %arg4[%c0_18, %c0_19], %10 {strides = array<i32>} : memref<64x128xf32, #tpu.memory_space<vmem>>, vector<64x128xf32>,
    return
  }
  func.func @transform_0(%arg0: i32) -> (i32, i32, i32, i32) {
    %c0_i32 = arith.constant 0 : i32
    %c0_i32_0 = arith.constant 0 : i32
    %c0_i32_1 = arith.constant 0 : i32
    %c0_i32_2 = arith.constant 0 : i32
    return %arg0, %c0_i32, %c0_i32_0, %c0_i32_1 : i32, i32, i32, i32
  }
  func.func @transform_1(%arg0: i32) -> (i32, i32) {
    %c0_i32 = arith.constant 0 : i32
    %c0_i32_0 = arith.constant 0 : i32
    %c0_i32_1 = arith.constant 0 : i32
    return %c0_i32, %c0_i32_0 : i32, i32
  }
  func.func @transform_2(%arg0: i32) -> (i32, i32) {
    %c0_i32 = arith.constant 0 : i32
    %c0_i32_0 = arith.constant 0 : i32
    %c0_i32_1 = arith.constant 0 : i32
    return %c0_i32, %c0_i32_0 : i32, i32
  }
  func.func @transform_3(%arg0: i32) -> (i32, i32) {
    %c0_i32 = arith.constant 0 : i32
    %c0_i32_0 = arith.constant 0 : i32
    return %arg0, %c0_i32 : i32, i32
  }
}

module attributes {stable_mosaic.version = 11 : i64} {
  func.func @_conv_meanpool_kernel(%arg0: i32, %arg1: memref<1x9x9x16xbf16, #tpu.memory_space<vmem>>, %arg2: memref<64x128xbf16, #tpu.memory_space<vmem>>, %arg3: memref<1x128xf32, #tpu.memory_space<vmem>>, %arg4: memref<64x128xf32, #tpu.memory_space<vmem>>) attributes {dimension_semantics = [#tpu.dimension_semantics<parallel>], iteration_bounds = array<i64: 2>, scalar_prefetch = 0 : i64, scratch_operands = 0 : i64, tpu.core_type = #tpu.core_type<tc>, window_params = [{transform_indices = @transform_0, window_bounds = array<i64: 1, 9, 9, 16>}, {pipeline_mode = #tpu.pipeline_mode<synchronous>, transform_indices = @transform_1, window_bounds = array<i64: 64, 128>}, {pipeline_mode = #tpu.pipeline_mode<synchronous>, transform_indices = @transform_2, window_bounds = array<i64: 1, 128>}, {transform_indices = @transform_3, window_bounds = array<i64: 64, 128>}]} {
    %c0 = arith.constant 0 : index
    %c0_0 = arith.constant 0 : index
    %c0_1 = arith.constant 0 : index
    %c0_2 = arith.constant 0 : index
    %0 = vector.load %arg1[%c0, %c0_0, %c0_1, %c0_2] : memref<1x9x9x16xbf16, #tpu.memory_space<vmem>>, vector<1x8x8x16xbf16>
    %c0_3 = arith.constant 0 : index
    %c0_4 = arith.constant 0 : index
    %c1 = arith.constant 1 : index
    %c0_5 = arith.constant 0 : index
    %1 = vector.load %arg1[%c0_3, %c0_4, %c1, %c0_5] : memref<1x9x9x16xbf16, #tpu.memory_space<vmem>>, vector<1x8x8x16xbf16>
    %c0_6 = arith.constant 0 : index
    %c1_7 = arith.constant 1 : index
    %c0_8 = arith.constant 0 : index
    %c0_9 = arith.constant 0 : index
    %2 = vector.load %arg1[%c0_6, %c1_7, %c0_8, %c0_9] : memref<1x9x9x16xbf16, #tpu.memory_space<vmem>>, vector<1x8x8x16xbf16>
    %c0_10 = arith.constant 0 : index
    %c1_11 = arith.constant 1 : index
    %c1_12 = arith.constant 1 : index
    %c0_13 = arith.constant 0 : index
    %3 = vector.load %arg1[%c0_10, %c1_11, %c1_12, %c0_13] : memref<1x9x9x16xbf16, #tpu.memory_space<vmem>>, vector<1x8x8x16xbf16>
    %4 = vector.shape_cast %0 : vector<1x8x8x16xbf16> to vector<64x16xbf16>
    %c0_14 = arith.constant 0 : index
    %c0_15 = arith.constant 0 : index
    %5 = vector.load %arg2[%c0_14, %c0_15] : memref<64x128xbf16, #tpu.memory_space<vmem>>, vector<16x128xbf16>
    %cst = arith.constant dense<0.000000e+00> : vector<64x128xf32>
    %6 = tpu.matmul %4, %5, %cst {dimension_numbers = #tpu.dot_dimension_numbers<[1], [0], [0], [1], [0, 0, 1, 1], [], []>} : vector<64x16xbf16>, vector<16x128xbf16>, vector<64x128xf32> -> vector<64x128xf32>
    %7 = vector.shape_cast %1 : vector<1x8x8x16xbf16> to vector<64x16xbf16>
    %c16 = arith.constant 16 : index
    %c0_16 = arith.constant 0 : index
    %8 = vector.load %arg2[%c16, %c0_16] : memref<64x128xbf16, #tpu.memory_space<vmem>>, vector<16x128xbf16>
    %cst_17 = arith.constant dense<0.000000e+00> : vector<64x128xf32>
    %9 = tpu.matmul %7, %8, %cst_17 {dimension_numbers = #tpu.dot_dimension_numbers<[1], [0], [0], [1], [0, 0, 1, 1], [], []>} : vector<64x16xbf16>, vector<16x128xbf16>, vector<64x128xf32> -> vector<64x128xf32>
    %10 = vector.shape_cast %2 : vector<1x8x8x16xbf16> to vector<64x16xbf16>
    %c32 = arith.constant 32 : index
    %c0_18 = arith.constant 0 : index
    %11 = vector.load %arg2[%c32, %c0_18] : memref<64x128xbf16, #tpu.memory_space<vmem>>, vector<16x128xbf16>
    %cst_19 = arith.constant dense<0.000000e+00> : vector<64x128xf32>
    %12 = tpu.matmul %10, %11, %cst_19 {dimension_numbers = #tpu.dot_dimension_numbers<[1], [0], [0], [1], [0, 0, 1, 1], [], []>} : vector<64x16xbf16>, vector<16x128xbf16>, vector<64x128xf32> -> vector<64x128xf32>
    %13 = vector.shape_cast %3 : vector<1x8x8x16xbf16> to vector<64x16xbf16>
    %c48 = arith.constant 48 : index
    %c0_20 = arith.constant 0 : index
    %14 = vector.load %arg2[%c48, %c0_20] : memref<64x128xbf16, #tpu.memory_space<vmem>>, vector<16x128xbf16>
    %cst_21 = arith.constant dense<0.000000e+00> : vector<64x128xf32>
    %15 = tpu.matmul %13, %14, %cst_21 {dimension_numbers = #tpu.dot_dimension_numbers<[1], [0], [0], [1], [0, 0, 1, 1], [], []>} : vector<64x16xbf16>, vector<16x128xbf16>, vector<64x128xf32> -> vector<64x128xf32>
    %16 = arith.addf %6, %9 : vector<64x128xf32>
    %17 = arith.addf %16, %12 : vector<64x128xf32>
    %18 = arith.addf %17, %15 : vector<64x128xf32>
    %c0_22 = arith.constant 0 : index
    %c0_23 = arith.constant 0 : index
    %19 = vector.load %arg3[%c0_22, %c0_23] : memref<1x128xf32, #tpu.memory_space<vmem>>, vector<1x128xf32>
    %20 = vector.broadcast %19 : vector<1x128xf32> to vector<64x128xf32>
    %21 = arith.addf %18, %20 : vector<64x128xf32>
    %c0_24 = arith.constant 0 : index
    %c0_25 = arith.constant 0 : index
    %22 = vector.load %arg4[%c0_24, %c0_25] : memref<64x128xf32, #tpu.memory_space<vmem>>, vector<64x128xf32>
    tpu.vector_store %arg4[%c0_24, %c0_25], %21 {strides = array<i32>} : memref<64x128xf32, #tpu.memory_space<vmem>>, vector<64x128xf32>,
    return
  }
  func.func @transform_0(%arg0: i32) -> (i32, i32, i32, i32) {
    %c0_i32 = arith.constant 0 : i32
    %c0_i32_0 = arith.constant 0 : i32
    %c0_i32_1 = arith.constant 0 : i32
    %c0_i32_2 = arith.constant 0 : i32
    return %arg0, %c0_i32, %c0_i32_0, %c0_i32_1 : i32, i32, i32, i32
  }
  func.func @transform_1(%arg0: i32) -> (i32, i32) {
    %c0_i32 = arith.constant 0 : i32
    %c0_i32_0 = arith.constant 0 : i32
    %c0_i32_1 = arith.constant 0 : i32
    return %c0_i32, %c0_i32_0 : i32, i32
  }
  func.func @transform_2(%arg0: i32) -> (i32, i32) {
    %c0_i32 = arith.constant 0 : i32
    %c0_i32_0 = arith.constant 0 : i32
    %c0_i32_1 = arith.constant 0 : i32
    return %c0_i32, %c0_i32_0 : i32, i32
  }
  func.func @transform_3(%arg0: i32) -> (i32, i32) {
    %c0_i32 = arith.constant 0 : i32
    %c0_i32_0 = arith.constant 0 : i32
    return %arg0, %c0_i32 : i32, i32
  }
}

</mosaic_0001>

<llo_original>
// kernel: tpu_custom_call.1
$region0: #{tpu_custom_call.1}
  #allocation0 [shape = 'u32[]', space=smem, size = 0x4, offset = 0x4, fixed_abs, tag = 'smem constant byte address 0x4 - core index']
  #allocation1 [shape = 'u32[144,128]{1,0:T(1,128)}', space=vmem, size = 0x12000, scoped, tag = 'internal scratch']
  %s0 = inlined_call_operand.vmem [shape: bf16[2,9,9,16], index: 0, kind: input, shape index: {}]
  %s1 = inlined_call_operand.vmem [shape: bf16[64,128], index: 1, kind: input, shape index: {}]
  %s2 = inlined_call_operand.vmem [shape: f32[1,128], index: 2, kind: input, shape index: {}]
  %s3 = inlined_call_operand.hbm [shape: f32[128,128], index: 3, kind: output, shape index: {}]
  %s4 = sld [smem:[#allocation0]]
  $region45: #{tpu_custom_call.1} parent=0
    _
  %s6 = ssub.s32 1, %s4
  %s7 = scalar_select 0, %s6, %s4
  $region1: #{tpu_custom_call.1} parent=0
    #allocation2 [shape = 'u8[65536]{0}', space=vmem, size = 0x10000, scoped, tag = 'output window, operand 0']
    #allocation3 [shape = 's32[2]{0}', space=sflag, size = 0x8, scoped, tag = 'scoped memory for tpu_custom_call.1']
    %8 = vsyncpa [#allocation3], 0
    %s9 = scalar_lea.sflag [#allocation3], 1
    %10 = vsyncpa %s9, 0
    loop: start=0, step=1, limit=4
    $region2: #{tpu_custom_call.1} parent=1 // loop_pre_header
      _
    $region3: #{tpu_custom_call.1} parent=1 // loop_header
      %s12 = sphi 0, %s16
      %p13 = scmp.ge.s32.totalorder %s12, 4
      %s22 = sphi 0, %s24
      %s25 = sphi 0, %s22
      %s26 = sphi 0, %s25
      %s42 = sphi 0, %s26
      %s46 = sphi 0, %s46
      %s48 = sphi 0, %s46
      %s49 = sphi 0, %s48
      %s63 = sphi 0, %s49
      %s67 = sphi 0, %s67
      %s69 = sphi 0, %s67
      %s70 = sphi 0, %s69
      %s84 = sphi 0, %s70
      %s90 = sphi 0, %s92
      %s93 = sphi 0, %s90
      %s94 = sphi 0, %s93
      %s110 = sphi 0, %s94
    $region4: #{tpu_custom_call.1} parent=1 // loop_header_branch
      %15 = sbr.rel (%p13) target = $region8
    $region5: #{tpu_custom_call.1} parent=1 // loop_body
      %s17 = ssub.s32 %s12, 1
      %s18 = ssub.s32 %s12, 2
      %s19 = sadd.s32 %s12, 1
      %s20 = ssub.s32 %s12, %s19
      %p21 = scmp.eq.s32.totalorder %s20, 0
      %s23 = sadd.s32 %s22, 1
      %s24 = scalar_select %p21, %s22, %s23
      %p27 = pneg %p21
      %p28 = scmp.eq.s32.totalorder %s12, 1
      %p29 = por %p27, %p28
      %p30 = scmp.ne.s32.totalorder %s22, %s25
      %p31 = scmp.eq.s32.totalorder %s12, 0
      %p32 = por %p30, %p31
      %p33 = scmp.ne.s32.totalorder %s22, %s25
      %p34 = scmp.eq.s32.totalorder %s17, 1
      %p35 = por %p33, %p34
      %p36 = scmp.ne.s32.totalorder %s25, %s26
      %p37 = scmp.eq.s32.totalorder %s17, 0
      %p38 = por %p36, %p37
      %p39 = scmp.ne.s32.totalorder %s25, %s26
      %p40 = scmp.eq.s32.totalorder %s18, 1
      %p41 = por %p39, %p40
      %p43 = scmp.ne.s32.totalorder %s26, %s42
      %p44 = scmp.eq.s32.totalorder %s18, 0
      %p45 = por %p43, %p44
      %s47 = sadd.s32 %s46, 1
      %p50 = scmp.eq.s32.totalorder %s12, 1
      %p51 = scmp.ne.s32.totalorder %s46, %s48
      %p52 = scmp.eq.s32.totalorder %s12, 0
      %p53 = por %p51, %p52
      %p54 = scmp.ne.s32.totalorder %s46, %s48
      %p55 = scmp.eq.s32.totalorder %s17, 1
      %p56 = por %p54, %p55
      %p57 = scmp.ne.s32.totalorder %s48, %s49
      %p58 = scmp.eq.s32.totalorder %s17, 0
      %p59 = por %p57, %p58
      %p60 = scmp.ne.s32.totalorder %s48, %s49
      %p61 = scmp.eq.s32.totalorder %s18, 1
      %p62 = por %p60, %p61
      %p64 = scmp.ne.s32.totalorder %s49, %s63
      %p65 = scmp.eq.s32.totalorder %s18, 0
      %p66 = por %p64, %p65
      %s68 = sadd.s32 %s67, 1
      %p71 = scmp.eq.s32.totalorder %s12, 1
      %p72 = scmp.ne.s32.totalorder %s67, %s69
      %p73 = scmp.eq.s32.totalorder %s12, 0
      %p74 = por %p72, %p73
      %p75 = scmp.ne.s32.totalorder %s67, %s69
      %p76 = scmp.eq.s32.totalorder %s17, 1
      %p77 = por %p75, %p76
      %p78 = scmp.ne.s32.totalorder %s69, %s70
      %p79 = scmp.eq.s32.totalorder %s17, 0
      %p80 = por %p78, %p79
      %p81 = scmp.ne.s32.totalorder %s69, %s70
      %p82 = scmp.eq.s32.totalorder %s18, 1
      %p83 = por %p81, %p82
      %p85 = scmp.ne.s32.totalorder %s70, %s84
      %p86 = scmp.eq.s32.totalorder %s18, 0
      %p87 = por %p85, %p86
      %s88 = ssub.s32 %s12, %s19
      %p89 = scmp.eq.s32.totalorder %s88, 0
      %s91 = sadd.s32 %s90, 1
      %s92 = scalar_select %p89, %s90, %s91
      %p95 = pneg %p89
      %p96 = scmp.eq.s32.totalorder %s12, 1
      %p97 = por %p95, %p96
      %p98 = scmp.ne.s32.totalorder %s90, %s93
      %p99 = scmp.eq.s32.totalorder %s12, 0
      %p100 = por %p98, %p99
      %p101 = scmp.ne.s32.totalorder %s90, %s93
      %p102 = scmp.eq.s32.totalorder %s17, 1
      %p103 = por %p101, %p102
      %p104 = scmp.ne.s32.totalorder %s93, %s94
      %p105 = scmp.eq.s32.totalorder %s17, 0
      %p106 = por %p104, %p105
      %p107 = scmp.ne.s32.totalorder %s93, %s94
      %p108 = scmp.eq.s32.totalorder %s18, 1
      %p109 = por %p107, %p108
      %p111 = scmp.ne.s32.totalorder %s94, %s110
      %p112 = scmp.eq.s32.totalorder %s18, 0
      %p113 = por %p111, %p112
      %p114 = scmp.le.s32.totalorder 1, %s12
      %p115 = scmp.lt.s32.totalorder %s12, 3
      %p116 = pnand %p114, %p115
      %p117 = pneg %p116
      // Predicated region
      $region9: #{tpu_custom_call.1} parent=5 // pred_check
        _
      $region10: #{tpu_custom_call.1} parent=5 // pred_check_branch
        %119 = sbr.rel (%p116) target = $region12
      $region11: #{tpu_custom_call.1} parent=5 // pred_region
        %s120 = ssub.s32 %s12, 1
        // Predicated region
        $region13: #{tpu_custom_call.1} parent=11 // pred_check
          %p121 = pneg %p59
        $region14: #{tpu_custom_call.1} parent=11 // pred_check_branch
          %123 = sbr.rel (%p121) target = $region16
        $region15: #{tpu_custom_call.1} parent=11 // pred_region
          _
        $region16: #{tpu_custom_call.1} parent=11 // pred_fallthru
          _
        // Predicated region
        $region17: #{tpu_custom_call.1} parent=11 // pred_check
          %p124 = pneg %p80
        $region18: #{tpu_custom_call.1} parent=11 // pred_check_branch
          %126 = sbr.rel (%p124) target = $region20
        $region19: #{tpu_custom_call.1} parent=11 // pred_region
          _
        $region20: #{tpu_custom_call.1} parent=11 // pred_fallthru
          _
      $region12: #{tpu_custom_call.1} parent=5 // pred_fallthru
        _
      %p127 = scmp.lt.s32.totalorder %s12, 2
      // Predicated region
      $region21: #{tpu_custom_call.1} parent=5 // pred_check
        %p128 = pneg %p127
      $region22: #{tpu_custom_call.1} parent=5 // pred_check_branch
        %130 = sbr.rel (%p128) target = $region24
      $region23: #{tpu_custom_call.1} parent=5 // pred_region
        // Predicated region
        $region25: #{tpu_custom_call.1} parent=23 // pred_check
          %p131 = pneg %p32
        $region26: #{tpu_custom_call.1} parent=23 // pred_check_branch
          %133 = sbr.rel (%p131) target = $region28
        $region27: #{tpu_custom_call.1} parent=23 // pred_region
          %p134 = scmp.lt.s32.totalorder %s12, 1
          %s135 = scalar_select %p134, %s12, 1
          %s136 = smul.addr %s135, 18
          %s137 = smul.addr %s136, 4
          %s138 = scalar_lea.vmem %s0, %s137
        $region28: #{tpu_custom_call.1} parent=23 // pred_fallthru
          _
      $region24: #{tpu_custom_call.1} parent=5 // pred_fallthru
        _
      %p139 = scmp.le.s32.totalorder 1, %s12
      %p140 = scmp.lt.s32.totalorder %s12, 3
      %p141 = pnand %p139, %p140
      %p142 = pneg %p141
      // Predicated region
      $region29: #{tpu_custom_call.1} parent=5 // pred_check
        _
      $region30: #{tpu_custom_call.1} parent=5 // pred_check_branch
        %144 = sbr.rel (%p141) target = $region32
      $region31: #{tpu_custom_call.1} parent=5 // pred_region
        %s145 = ssub.s32 %s12, 1
        %p146 = scmp.lt.s32.totalorder %s17, 1
        %s147 = scalar_select %p146, %s17, 1
        %s148 = smul.addr %s147, 18
        %s149 = smul.addr %s148, 4
        %s150 = scalar_lea.vmem %s0, %s149
        %p151 = pneg %p38
        %p152 = pneg %p35
        %p153 = pneg %p59
        %p154 = pneg %p56
        %p155 = pneg %p80
        %p156 = pneg %p77
        %p157 = pneg %p106
        %p158 = pneg %p103
        %s159 = sand.u32 %s93, 1
        %s160 = scalar_lea.sflag [#allocation3], %s159
        %s161 = sand.u32 %s93, 1
        %s162 = smul.addr %s161, 64
        %s163 = scalar_lea.vmem [#allocation2], %s162
        %p164 = scmp.lt.s32.totalorder %s17, 1
        %s165 = scalar_select %p164, %s17, 1
        %s166 = smul.addr %s165, 18
        %s167 = smul.addr %s166, 4
        %s168 = scalar_lea.vmem %s0, %s167
        %s169 = smul.u32 8, %s17
        %v171 = vld [vmem:[%s168] sm:$0xf]
        %v172 = vld [vmem:[%s168 + $0x8] sm:$0xf]
        %v173 = vld [vmem:[%s168 + $0x10] sm:$0xf]
        %v174 = vld [vmem:[%s168 + $0x18] sm:$0xf]
        %v175 = vld [vmem:[%s168 + $0x20] sm:$0xf]
        %v176 = vld [vmem:[%s168 + $0x28] sm:$0xf]
        %v177 = vld [vmem:[%s168 + $0x30] sm:$0xf]
        %v178 = vld [vmem:[%s168 + $0x38] sm:$0xf]
        %v179 = vld [vmem:[%s168 + $0x4] sm:$0x1]
        %v180 = vld [vmem:[%s168 + $0xc] sm:$0x1]
        %v181 = vld [vmem:[%s168 + $0x14] sm:$0x1]
        %v182 = vld [vmem:[%s168 + $0x1c] sm:$0x1]
        %v183 = vld [vmem:[%s168 + $0x24] sm:$0x1]
        %v184 = vld [vmem:[%s168 + $0x2c] sm:$0x1]
        %v185 = vld [vmem:[%s168 + $0x34] sm:$0x1]
        %v186 = vld [vmem:[%s168 + $0x3c] sm:$0x1]
        %s187 = scalar_lea.vmem %s168, 8
        %v188 = vld [vmem:[%s187] sm:$0xf]
        %v189 = vld [vmem:[%s187 + $0x8] sm:$0xf]
        %v190 = vld [vmem:[%s187 + $0x10] sm:$0xf]
        %v191 = vld [vmem:[%s187 + $0x18] sm:$0xf]
        %v192 = vld [vmem:[%s187 + $0x20] sm:$0xf]
        %v193 = vld [vmem:[%s187 + $0x28] sm:$0xf]
        %v194 = vld [vmem:[%s187 + $0x30] sm:$0xf]
        %v195 = vld [vmem:[%s187 + $0x38] sm:$0xf]
        %v196 = vld [vmem:[%s187 + $0x4] sm:$0x1]
        %v197 = vld [vmem:[%s187 + $0xc] sm:$0x1]
        %v198 = vld [vmem:[%s187 + $0x14] sm:$0x1]
        %v199 = vld [vmem:[%s187 + $0x1c] sm:$0x1]
        %v200 = vld [vmem:[%s187 + $0x24] sm:$0x1]
        %v201 = vld [vmem:[%s187 + $0x2c] sm:$0x1]
        %v202 = vld [vmem:[%s187 + $0x34] sm:$0x1]
        %v203 = vld [vmem:[%s187 + $0x3c] sm:$0x1]
        %v220 = vunpack.c.l.b16 %v171
        %v221 = vunpack.c.l.b16 %v179
        %v222 = vunpack.c.l.b16 %v172
        %v223 = vunpack.c.l.b16 %v180
        %v224 = vunpack.c.l.b16 %v173
        %v225 = vunpack.c.l.b16 %v181
        %v226 = vunpack.c.l.b16 %v174
        %v227 = vunpack.c.l.b16 %v182
        %v228 = vunpack.c.l.b16 %v175
        %v229 = vunpack.c.l.b16 %v183
        %v230 = vunpack.c.l.b16 %v176
        %v231 = vunpack.c.l.b16 %v184
        %v232 = vunpack.c.l.b16 %v177
        %v233 = vunpack.c.l.b16 %v185
        %v234 = vunpack.c.l.b16 %v178
        %v235 = vunpack.c.l.b16 %v186
        %v236 = vpack.c.b16 %v221, %v220
        %v237 = vpack.c.b16 %v223, %v222
        %v238 = vpack.c.b16 %v225, %v224
        %v239 = vpack.c.b16 %v227, %v226
        %v240 = vpack.c.b16 %v229, %v228
        %v241 = vpack.c.b16 %v231, %v230
        %v242 = vpack.c.b16 %v233, %v232
        %v243 = vpack.c.b16 %v235, %v234
        %v245 = vshrl.u32 %v236, 16
        %v247 = vshll.u32 %v236, 16
        %v249 = vrot.slane %v247, 1
        %v250 = vor.u32 %v245, %v249
        %v252 = vshrl.u32 %v237, 16
        %v254 = vshll.u32 %v237, 16
        %v256 = vrot.slane %v254, 1
        %v257 = vor.u32 %v252, %v256
        %v259 = vshrl.u32 %v238, 16
        %v261 = vshll.u32 %v238, 16
        %v263 = vrot.slane %v261, 1
        %v264 = vor.u32 %v259, %v263
        %v266 = vshrl.u32 %v239, 16
        %v268 = vshll.u32 %v239, 16
        %v270 = vrot.slane %v268, 1
        %v271 = vor.u32 %v266, %v270
        %v273 = vshrl.u32 %v240, 16
        %v275 = vshll.u32 %v240, 16
        %v277 = vrot.slane %v275, 1
        %v278 = vor.u32 %v273, %v277
        %v280 = vshrl.u32 %v241, 16
        %v282 = vshll.u32 %v241, 16
        %v284 = vrot.slane %v282, 1
        %v285 = vor.u32 %v280, %v284
        %v287 = vshrl.u32 %v242, 16
        %v289 = vshll.u32 %v242, 16
        %v291 = vrot.slane %v289, 1
        %v292 = vor.u32 %v287, %v291
        %v294 = vshrl.u32 %v243, 16
        %v296 = vshll.u32 %v243, 16
        %v298 = vrot.slane %v296, 1
        %v299 = vor.u32 %v294, %v298
        %300 = vrot.lane.b32.xlu0 %v250, 16
        %v301 = vpop.permute.xlu0 %300
        %302 = vrot.lane.b32.xlu0 %v257, 16
        %v303 = vpop.permute.xlu0 %302
        %304 = vrot.lane.b32.xlu0 %v264, 16
        %v305 = vpop.permute.xlu0 %304
        %306 = vrot.lane.b32.xlu0 %v271, 16
        %v307 = vpop.permute.xlu0 %306
        %308 = vrot.lane.b32.xlu0 %v278, 16
        %v309 = vpop.permute.xlu0 %308
        %310 = vrot.lane.b32.xlu0 %v285, 16
        %v311 = vpop.permute.xlu0 %310
        %312 = vrot.lane.b32.xlu0 %v292, 16
        %v313 = vpop.permute.xlu0 %312
        %314 = vrot.lane.b32.xlu0 %v299, 16
        %v315 = vpop.permute.xlu0 %314
        %v324 = vunpack.c.l.b16 %v188
        %v325 = vunpack.c.l.b16 %v189
        %v326 = vunpack.c.l.b16 %v190
        %v327 = vunpack.c.l.b16 %v191
        %v328 = vunpack.c.l.b16 %v192
        %v329 = vunpack.c.l.b16 %v193
        %v330 = vunpack.c.l.b16 %v194
        %v331 = vunpack.c.l.b16 %v195
        %v332 = vpack.c.b16 %v324, %v324
        %v333 = vpack.c.b16 %v325, %v325
        %v334 = vpack.c.b16 %v326, %v326
        %v335 = vpack.c.b16 %v327, %v327
        %v336 = vpack.c.b16 %v328, %v328
        %v337 = vpack.c.b16 %v329, %v329
        %v338 = vpack.c.b16 %v330, %v330
        %v339 = vpack.c.b16 %v331, %v331
        %340 = vrot.lane.b32.xlu0 %v332, 32
        %v341 = vpop.permute.xlu0 %340
        %342 = vrot.lane.b32.xlu0 %v333, 32
        %v343 = vpop.permute.xlu0 %342
        %344 = vrot.lane.b32.xlu0 %v334, 32
        %v345 = vpop.permute.xlu0 %344
        %346 = vrot.lane.b32.xlu0 %v335, 32
        %v347 = vpop.permute.xlu0 %346
        %348 = vrot.lane.b32.xlu0 %v336, 32
        %v349 = vpop.permute.xlu0 %348
        %350 = vrot.lane.b32.xlu0 %v337, 32
        %v351 = vpop.permute.xlu0 %350
        %352 = vrot.lane.b32.xlu0 %v338, 32
        %v353 = vpop.permute.xlu0 %352
        %354 = vrot.lane.b32.xlu0 %v339, 32
        %v355 = vpop.permute.xlu0 %354
        %v364 = vunpack.c.l.b16 %v196
        %v365 = vunpack.c.l.b16 %v197
        %v366 = vunpack.c.l.b16 %v198
        %v367 = vunpack.c.l.b16 %v199
        %v368 = vunpack.c.l.b16 %v200
        %v369 = vunpack.c.l.b16 %v201
        %v370 = vunpack.c.l.b16 %v202
        %v371 = vunpack.c.l.b16 %v203
        %v372 = vpack.c.b16 %v364, %v324
        %v373 = vpack.c.b16 %v365, %v325
        %v374 = vpack.c.b16 %v366, %v326
        %v375 = vpack.c.b16 %v367, %v327
        %v376 = vpack.c.b16 %v368, %v328
        %v377 = vpack.c.b16 %v369, %v329
        %v378 = vpack.c.b16 %v370, %v330
        %v379 = vpack.c.b16 %v371, %v331
        %v381 = vshrl.u32 %v372, 16
        %v383 = vshll.u32 %v372, 16
        %v385 = vrot.slane %v383, 1
        %v386 = vor.u32 %v381, %v385
        %v388 = vshrl.u32 %v373, 16
        %v390 = vshll.u32 %v373, 16
        %v392 = vrot.slane %v390, 1
        %v393 = vor.u32 %v388, %v392
        %v395 = vshrl.u32 %v374, 16
        %v397 = vshll.u32 %v374, 16
        %v399 = vrot.slane %v397, 1
        %v400 = vor.u32 %v395, %v399
        %v402 = vshrl.u32 %v375, 16
        %v404 = vshll.u32 %v375, 16
        %v406 = vrot.slane %v404, 1
        %v407 = vor.u32 %v402, %v406
        %v409 = vshrl.u32 %v376, 16
        %v411 = vshll.u32 %v376, 16
        %v413 = vrot.slane %v411, 1
        %v414 = vor.u32 %v409, %v413
        %v416 = vshrl.u32 %v377, 16
        %v418 = vshll.u32 %v377, 16
        %v420 = vrot.slane %v418, 1
        %v421 = vor.u32 %v416, %v420
        %v423 = vshrl.u32 %v378, 16
        %v425 = vshll.u32 %v378, 16
        %v427 = vrot.slane %v425, 1
        %v428 = vor.u32 %v423, %v427
        %v430 = vshrl.u32 %v379, 16
        %v432 = vshll.u32 %v379, 16
        %v434 = vrot.slane %v432, 1
        %v435 = vor.u32 %v430, %v434
        %436 = vrot.lane.b32.xlu0 %v386, 48
        %v437 = vpop.permute.xlu0 %436
        %438 = vrot.lane.b32.xlu0 %v393, 48
        %v439 = vpop.permute.xlu0 %438
        %440 = vrot.lane.b32.xlu0 %v400, 48
        %v441 = vpop.permute.xlu0 %440
        %442 = vrot.lane.b32.xlu0 %v407, 48
        %v443 = vpop.permute.xlu0 %442
        %444 = vrot.lane.b32.xlu0 %v414, 48
        %v445 = vpop.permute.xlu0 %444
        %446 = vrot.lane.b32.xlu0 %v421, 48
        %v447 = vpop.permute.xlu0 %446
        %448 = vrot.lane.b32.xlu0 %v428, 48
        %v449 = vpop.permute.xlu0 %448
        %450 = vrot.lane.b32.xlu0 %v435, 48
        %v451 = vpop.permute.xlu0 %450
        %vm452 = vcmask 130048
        %v455 = vsel %vm452, %v171, %v301
        %v458 = vsel %vm452, %v172, %v303
        %v461 = vsel %vm452, %v173, %v305
        %v464 = vsel %vm452, %v174, %v307
        %v467 = vsel %vm452, %v175, %v309
        %v470 = vsel %vm452, %v176, %v311
        %v473 = vsel %vm452, %v177, %v313
        %v476 = vsel %vm452, %v178, %v315
        %vm477 = vcmask 261120
        %v479 = vsel %vm477, %v455, %v341
        %v481 = vsel %vm477, %v458, %v343
        %v483 = vsel %vm477, %v461, %v345
        %v485 = vsel %vm477, %v464, %v347
        %v487 = vsel %vm477, %v467, %v349
        %v489 = vsel %vm477, %v470, %v351
        %v491 = vsel %vm477, %v473, %v353
        %v493 = vsel %vm477, %v476, %v355
        %vm494 = vcmask 392192
        %v496 = vsel %vm494, %v479, %v437
        %v498 = vsel %vm494, %v481, %v439
        %v500 = vsel %vm494, %v483, %v441
        %v502 = vsel %vm494, %v485, %v443
        %v504 = vsel %vm494, %v487, %v445
        %v506 = vsel %vm494, %v489, %v447
        %v508 = vsel %vm494, %v491, %v449
        %v510 = vsel %vm494, %v493, %v451
        %v511 = vld [vmem:[%s1] sm:$0xf]
        %v512 = vld [vmem:[%s1 + $0x4] sm:$0xf]
        %v513 = vld [vmem:[%s1 + $0x8] sm:$0xf]
        %v514 = vld [vmem:[%s1 + $0xc] sm:$0xf]
        %v515 = vld [vmem:[%s1 + $0x10] sm:$0xf]
        %v516 = vld [vmem:[%s1 + $0x14] sm:$0xf]
        %v517 = vld [vmem:[%s1 + $0x18] sm:$0xf]
        %v518 = vld [vmem:[%s1 + $0x1c] sm:$0xf]
        %v519 = vld [vmem:[%s2] sm:$0x1]
        %v521 = vlaneseq
        %v522 = vshrl.u32 %v521, 7
        %v523 = vsub.s32 0, %v522
        %v524 = vrot.slane %v519, %v523
        %v534 = vunpack.c.l.b16 %v496
        %v535 = vunpack.c.l.b16 %v498
        %v536 = vunpack.c.l.b16 %v500
        %v537 = vunpack.c.l.b16 %v502
        %v538 = vunpack.c.l.b16 %v504
        %v539 = vunpack.c.l.b16 %v506
        %v540 = vunpack.c.l.b16 %v508
        %v541 = vunpack.c.l.b16 %v510
        %v542 = vpack.c.b16 %v535, %v534
        %v543 = vpack.c.b16 %v537, %v536
        %v544 = vpack.c.b16 %v539, %v538
        %v545 = vpack.c.b16 %v541, %v540
        %v554 = vunpack.c.l.b16 %v511
        %v555 = vunpack.c.l.b16 %v512
        %v556 = vunpack.c.l.b16 %v513
        %v557 = vunpack.c.l.b16 %v514
        %v558 = vunpack.c.l.b16 %v515
        %v559 = vunpack.c.l.b16 %v516
        %v560 = vunpack.c.l.b16 %v517
        %v561 = vunpack.c.l.b16 %v518
        %v562 = vpack.c.b16 %v555, %v554
        %v563 = vpack.c.b16 %v557, %v556
        %v564 = vpack.c.b16 %v559, %v558
        %v565 = vpack.c.b16 %v561, %v560
        %vm570 = vcmask 523264
        %v572 = vsel %vm570, %v542, 0
        %v575 = vsel %vm570, %v543, 0
        %v578 = vsel %vm570, %v544, 0
        %v581 = vsel %vm570, %v545, 0
        %583 = vmatprep.subr.bf16.mxu0 0
        %584 = vmatpush1.bf16.msra.mxu0 %v562
        %585 = vmatprep.subr.bf16.mxu0 0
        %586 = vmatpush1.bf16.msra.mxu0 %v563
        %587 = vmatprep.subr.bf16.mxu0 0
        %588 = vmatpush1.bf16.msra.mxu0 %v564
        %589 = vmatprep.subr.bf16.mxu0 0
        %590 = vmatpush1.bf16.msra.mxu0 %v565
        %591 = vmatprep.subr.bf16.mxu0 0
        %592 = vmatpush1.bf16.msra.mxu0 0
        %593 = vmatprep.subr.bf16.mxu0 0
        %594 = vmatpush1.bf16.msra.mxu0 0
        %595 = vmatprep.subr.bf16.mxu0 0
        %596 = vmatpush1.bf16.msra.mxu0 0
        %597 = vmatprep.subr.bf16.mxu0 0
        %598 = vmatpush1.bf16.msra.mxu0 0
        %599 = vmatprep.subr.bf16.mxu0 0
        %600 = vmatpush1.bf16.msra.mxu0 0
        %601 = vmatprep.subr.bf16.mxu0 0
        %602 = vmatpush1.bf16.msra.mxu0 0
        %603 = vmatprep.subr.bf16.mxu0 0
        %604 = vmatpush1.bf16.msra.mxu0 0
        %605 = vmatprep.subr.bf16.mxu0 0
        %606 = vmatpush1.bf16.msra.mxu0 0
        %607 = vmatprep.subr.bf16.mxu0 0
        %608 = vmatpush1.bf16.msra.mxu0 0
        %609 = vmatprep.subr.bf16.mxu0 0
        %610 = vmatpush1.bf16.msra.mxu0 0
        %611 = vmatprep.subr.bf16.mxu0 0
        %612 = vmatpush1.bf16.msra.mxu0 0
        %613 = vmatprep.subr.bf16.mxu0 0
        %614 = vmatpush1.bf16.msra.mxu0 0
        %615 = vmatprep.mubr.bf16.mxu0 0
        %616 = vmatmul.mubr.bf16.gmra.mrb[0].mxu0 %v572
        %v617 = vpop.f32.mrb[0].mxu0
        %v618 = vadd.f32 %v524, %v617
        %v619 = vpop.f32.mrb[0].mxu0
        %v620 = vpop.f32.mrb[0].mxu0
        %v621 = vadd.f32 %v524, %v620
        %v622 = vpop.f32.mrb[0].mxu0
        %623 = vmatprep.mubr.bf16.mxu0 0
        %624 = vmatmul.mubr.bf16.gmra.mrb[0].mxu0 %v575
        %v625 = vpop.f32.mrb[0].mxu0
        %v626 = vadd.f32 %v524, %v625
        %v627 = vpop.f32.mrb[0].mxu0
        %v628 = vpop.f32.mrb[0].mxu0
        %v629 = vadd.f32 %v524, %v628
        %v630 = vpop.f32.mrb[0].mxu0
        %631 = vmatprep.mubr.bf16.mxu0 0
        %632 = vmatmul.mubr.bf16.gmra.mrb[0].mxu0 %v578
        %v633 = vpop.f32.mrb[0].mxu0
        %v634 = vadd.f32 %v524, %v633
        %v635 = vpop.f32.mrb[0].mxu0
        %v636 = vpop.f32.mrb[0].mxu0
        %v637 = vadd.f32 %v524, %v636
        %v638 = vpop.f32.mrb[0].mxu0
        %639 = vmatprep.mubr.bf16.mxu0 0
        %640 = vmatmul.mubr.bf16.gmra.mrb[0].mxu0 %v581
        %v641 = vpop.f32.mrb[0].mxu0
        %v642 = vadd.f32 %v524, %v641
        %v643 = vpop.f32.mrb[0].mxu0
        %v644 = vpop.f32.mrb[0].mxu0
        %v645 = vadd.f32 %v524, %v644
        %v646 = vpop.f32.mrb[0].mxu0
        %647 = vdwg.mxu0
        %648 = vst [vmem:[%s163] sm:$0xff] %v618
        %649 = vst [vmem:[%s163 + $0x8] sm:$0xff] %v621
        %650 = vst [vmem:[%s163 + $0x10] sm:$0xff] %v626
        %651 = vst [vmem:[%s163 + $0x18] sm:$0xff] %v629
        %652 = vst [vmem:[%s163 + $0x20] sm:$0xff] %v634
        %653 = vst [vmem:[%s163 + $0x28] sm:$0xff] %v637
        %654 = vst [vmem:[%s163 + $0x30] sm:$0xff] %v642
        %655 = vst [vmem:[%s163 + $0x38] sm:$0xff] %v645
        %s656 = sand.u32 %s93, 1
        %s657 = scalar_lea.sflag [#allocation3], %s656
        %s658 = sand.u32 %s93, 1
        %s659 = smul.addr %s658, 64
        %s660 = scalar_lea.vmem [#allocation2], %s659
        // Predicated region
        $region33: #{tpu_custom_call.1} parent=31 // pred_check
          %p661 = pneg %p103
        $region34: #{tpu_custom_call.1} parent=31 // pred_check_branch
          %663 = sbr.rel (%p661) target = $region36
        $region35: #{tpu_custom_call.1} parent=31 // pred_region
          %s664 = smul.u32 8, %s17
          %s666 = ssub.s32 1024, 1024
          %667 = vsyncadd %s657, %s666
          %s668 = smul.addr %s664, 128
          %s669 = scalar_lea.hbm %s3, %s668
          %s670 = sshll.u32 %s660, 4
          %s671 = int_to_ptr.vmem [resolvable:$true] %s670
          %676 = dma.vmem_to_hbm [thread:$0]  %s671, 1024, %s669, %s657, 128, 128, 8
        $region36: #{tpu_custom_call.1} parent=31 // pred_fallthru
          _
      $region32: #{tpu_custom_call.1} parent=5 // pred_fallthru
        _
      %p677 = scmp.le.s32.totalorder 2, %s12
      // Predicated region
      $region37: #{tpu_custom_call.1} parent=5 // pred_check
        %p678 = pneg %p677
      $region38: #{tpu_custom_call.1} parent=5 // pred_check_branch
        %680 = sbr.rel (%p678) target = $region40
      $region39: #{tpu_custom_call.1} parent=5 // pred_region
        %s681 = ssub.s32 %s12, 2
        // Predicated region
        $region41: #{tpu_custom_call.1} parent=39 // pred_check
          %p682 = pneg %p109
        $region42: #{tpu_custom_call.1} parent=39 // pred_check_branch
          %684 = sbr.rel (%p682) target = $region44
        $region43: #{tpu_custom_call.1} parent=39 // pred_region
          %s685 = sand.u32 %s94, 1
          %s686 = scalar_lea.sflag [#allocation3], %s685
          %s687 = sand.u32 %s94, 1
          %s688 = smul.addr %s687, 64
          %s689 = scalar_lea.vmem [#allocation2], %s688
          %690 = dma.done %s686, 1024
        $region44: #{tpu_custom_call.1} parent=39 // pred_fallthru
          _
      $region40: #{tpu_custom_call.1} parent=5 // pred_fallthru
        _
    $region6: #{tpu_custom_call.1} parent=1 // loop_footer
      %s16 = sadd.s32 1, %s12
    $region7: #{tpu_custom_call.1} parent=1 // loop_footer_branch
      %11 = sbr.rel target = $region3
    $region8: #{tpu_custom_call.1} parent=1 // loop_exit
      _
    %691 = vsyncpa [#allocation3], 1
    %s692 = scalar_lea.sflag [#allocation3], 1
    %693 = vsyncpa %s692, 1

// kernel: tpu_custom_call.1
$region0: #{tpu_custom_call.1}
  #allocation0 [shape = 'u32[]', space=smem, size = 0x4, offset = 0x4, fixed_abs, tag = 'smem constant byte address 0x4 - core index']
  #allocation1 [shape = 'u32[144,128]{1,0:T(1,128)}', space=vmem, size = 0x12000, scoped, tag = 'internal scratch']
  %s0 = inlined_call_operand.vmem [shape: bf16[2,9,9,16], index: 0, kind: input, shape index: {}]
  %s1 = inlined_call_operand.vmem [shape: bf16[64,128], index: 1, kind: input, shape index: {}]
  %s2 = inlined_call_operand.vmem [shape: f32[1,128], index: 2, kind: input, shape index: {}]
  %s3 = inlined_call_operand.hbm [shape: f32[128,128], index: 3, kind: output, shape index: {}]
  %s4 = sld [smem:[#allocation0]]
  $region45: #{tpu_custom_call.1} parent=0
    _
  %s6 = ssub.s32 1, %s4
  %s7 = scalar_select 0, %s6, %s4
  $region1: #{tpu_custom_call.1} parent=0
    #allocation2 [shape = 'u8[65536]{0}', space=vmem, size = 0x10000, scoped, tag = 'output window, operand 0']
    #allocation3 [shape = 's32[2]{0}', space=sflag, size = 0x8, scoped, tag = 'scoped memory for tpu_custom_call.1']
    %8 = vsyncpa [#allocation3], 0
    %s9 = scalar_lea.sflag [#allocation3], 1
    %10 = vsyncpa %s9, 0
    loop: start=0, step=1, limit=4
    $region2: #{tpu_custom_call.1} parent=1 // loop_pre_header
      _
    $region3: #{tpu_custom_call.1} parent=1 // loop_header
      %s12 = sphi 0, %s16
      %p13 = scmp.ge.s32.totalorder %s12, 4
      %s22 = sphi 0, %s24
      %s25 = sphi 0, %s22
      %s26 = sphi 0, %s25
      %s42 = sphi 0, %s26
      %s46 = sphi 0, %s46
      %s48 = sphi 0, %s46
      %s49 = sphi 0, %s48
      %s63 = sphi 0, %s49
      %s67 = sphi 0, %s67
      %s69 = sphi 0, %s67
      %s70 = sphi 0, %s69
      %s84 = sphi 0, %s70
      %s90 = sphi 0, %s92
      %s93 = sphi 0, %s90
      %s94 = sphi 0, %s93
      %s110 = sphi 0, %s94
    $region4: #{tpu_custom_call.1} parent=1 // loop_header_branch
      %15 = sbr.rel (%p13) target = $region8
    $region5: #{tpu_custom_call.1} parent=1 // loop_body
      %s17 = ssub.s32 %s12, 1
      %s18 = ssub.s32 %s12, 2
      %s19 = sadd.s32 %s12, 1
      %s20 = ssub.s32 %s12, %s19
      %p21 = scmp.eq.s32.totalorder %s20, 0
      %s23 = sadd.s32 %s22, 1
      %s24 = scalar_select %p21, %s22, %s23
      %p27 = pneg %p21
      %p28 = scmp.eq.s32.totalorder %s12, 1
      %p29 = por %p27, %p28
      %p30 = scmp.ne.s32.totalorder %s22, %s25
      %p31 = scmp.eq.s32.totalorder %s12, 0
      %p32 = por %p30, %p31
      %p33 = scmp.ne.s32.totalorder %s22, %s25
      %p34 = scmp.eq.s32.totalorder %s17, 1
      %p35 = por %p33, %p34
      %p36 = scmp.ne.s32.totalorder %s25, %s26
      %p37 = scmp.eq.s32.totalorder %s17, 0
      %p38 = por %p36, %p37
      %p39 = scmp.ne.s32.totalorder %s25, %s26
      %p40 = scmp.eq.s32.totalorder %s18, 1
      %p41 = por %p39, %p40
      %p43 = scmp.ne.s32.totalorder %s26, %s42
      %p44 = scmp.eq.s32.totalorder %s18, 0
      %p45 = por %p43, %p44
      %s47 = sadd.s32 %s46, 1
      %p50 = scmp.eq.s32.totalorder %s12, 1
      %p51 = scmp.ne.s32.totalorder %s46, %s48
      %p52 = scmp.eq.s32.totalorder %s12, 0
      %p53 = por %p51, %p52
      %p54 = scmp.ne.s32.totalorder %s46, %s48
      %p55 = scmp.eq.s32.totalorder %s17, 1
      %p56 = por %p54, %p55
      %p57 = scmp.ne.s32.totalorder %s48, %s49
      %p58 = scmp.eq.s32.totalorder %s17, 0
      %p59 = por %p57, %p58
      %p60 = scmp.ne.s32.totalorder %s48, %s49
      %p61 = scmp.eq.s32.totalorder %s18, 1
      %p62 = por %p60, %p61
      %p64 = scmp.ne.s32.totalorder %s49, %s63
      %p65 = scmp.eq.s32.totalorder %s18, 0
      %p66 = por %p64, %p65
      %s68 = sadd.s32 %s67, 1
      %p71 = scmp.eq.s32.totalorder %s12, 1
      %p72 = scmp.ne.s32.totalorder %s67, %s69
      %p73 = scmp.eq.s32.totalorder %s12, 0
      %p74 = por %p72, %p73
      %p75 = scmp.ne.s32.totalorder %s67, %s69
      %p76 = scmp.eq.s32.totalorder %s17, 1
      %p77 = por %p75, %p76
      %p78 = scmp.ne.s32.totalorder %s69, %s70
      %p79 = scmp.eq.s32.totalorder %s17, 0
      %p80 = por %p78, %p79
      %p81 = scmp.ne.s32.totalorder %s69, %s70
      %p82 = scmp.eq.s32.totalorder %s18, 1
      %p83 = por %p81, %p82
      %p85 = scmp.ne.s32.totalorder %s70, %s84
      %p86 = scmp.eq.s32.totalorder %s18, 0
      %p87 = por %p85, %p86
      %s88 = ssub.s32 %s12, %s19
      %p89 = scmp.eq.s32.totalorder %s88, 0
      %s91 = sadd.s32 %s90, 1
      %s92 = scalar_select %p89, %s90, %s91
      %p95 = pneg %p89
      %p96 = scmp.eq.s32.totalorder %s12, 1
      %p97 = por %p95, %p96
      %p98 = scmp.ne.s32.totalorder %s90, %s93
      %p99 = scmp.eq.s32.totalorder %s12, 0
      %p100 = por %p98, %p99
      %p101 = scmp.ne.s32.totalorder %s90, %s93
      %p102 = scmp.eq.s32.totalorder %s17, 1
      %p103 = por %p101, %p102
      %p104 = scmp.ne.s32.totalorder %s93, %s94
      %p105 = scmp.eq.s32.totalorder %s17, 0
      %p106 = por %p104, %p105
      %p107 = scmp.ne.s32.totalorder %s93, %s94
      %p108 = scmp.eq.s32.totalorder %s18, 1
      %p109 = por %p107, %p108
      %p111 = scmp.ne.s32.totalorder %s94, %s110
      %p112 = scmp.eq.s32.totalorder %s18, 0
      %p113 = por %p111, %p112
      %p114 = scmp.le.s32.totalorder 1, %s12
      %p115 = scmp.lt.s32.totalorder %s12, 3
      %p116 = pnand %p114, %p115
      %p117 = pneg %p116
      // Predicated region
      $region9: #{tpu_custom_call.1} parent=5 // pred_check
        _
      $region10: #{tpu_custom_call.1} parent=5 // pred_check_branch
        %119 = sbr.rel (%p116) target = $region12
      $region11: #{tpu_custom_call.1} parent=5 // pred_region
        %s120 = ssub.s32 %s12, 1
        // Predicated region
        $region13: #{tpu_custom_call.1} parent=11 // pred_check
          %p121 = pneg %p59
        $region14: #{tpu_custom_call.1} parent=11 // pred_check_branch
          %123 = sbr.rel (%p121) target = $region16
        $region15: #{tpu_custom_call.1} parent=11 // pred_region
          _
        $region16: #{tpu_custom_call.1} parent=11 // pred_fallthru
          _
        // Predicated region
        $region17: #{tpu_custom_call.1} parent=11 // pred_check
          %p124 = pneg %p80
        $region18: #{tpu_custom_call.1} parent=11 // pred_check_branch
          %126 = sbr.rel (%p124) target = $region20
        $region19: #{tpu_custom_call.1} parent=11 // pred_region
          _
        $region20: #{tpu_custom_call.1} parent=11 // pred_fallthru
          _
      $region12: #{tpu_custom_call.1} parent=5 // pred_fallthru
        _
      %p127 = scmp.lt.s32.totalorder %s12, 2
      // Predicated region
      $region21: #{tpu_custom_call.1} parent=5 // pred_check
        %p128 = pneg %p127
      $region22: #{tpu_custom_call.1} parent=5 // pred_check_branch
        %130 = sbr.rel (%p128) target = $region24
      $region23: #{tpu_custom_call.1} parent=5 // pred_region
        // Predicated region
        $region25: #{tpu_custom_call.1} parent=23 // pred_check
          %p131 = pneg %p32
        $region26: #{tpu_custom_call.1} parent=23 // pred_check_branch
          %133 = sbr.rel (%p131) target = $region28
        $region27: #{tpu_custom_call.1} parent=23 // pred_region
          %p134 = scmp.lt.s32.totalorder %s12, 1
          %s135 = scalar_select %p134, %s12, 1
          %s136 = smul.addr %s135, 18
          %s137 = smul.addr %s136, 4
          %s138 = scalar_lea.vmem %s0, %s137
        $region28: #{tpu_custom_call.1} parent=23 // pred_fallthru
          _
      $region24: #{tpu_custom_call.1} parent=5 // pred_fallthru
        _
      %p139 = scmp.le.s32.totalorder 1, %s12
      %p140 = scmp.lt.s32.totalorder %s12, 3
      %p141 = pnand %p139, %p140
      %p142 = pneg %p141
      // Predicated region
      $region29: #{tpu_custom_call.1} parent=5 // pred_check
        _
      $region30: #{tpu_custom_call.1} parent=5 // pred_check_branch
        %144 = sbr.rel (%p141) target = $region32
      $region31: #{tpu_custom_call.1} parent=5 // pred_region
        %s145 = ssub.s32 %s12, 1
        %p146 = scmp.lt.s32.totalorder %s17, 1
        %s147 = scalar_select %p146, %s17, 1
        %s148 = smul.addr %s147, 18
        %s149 = smul.addr %s148, 4
        %s150 = scalar_lea.vmem %s0, %s149
        %p151 = pneg %p38
        %p152 = pneg %p35
        %p153 = pneg %p59
        %p154 = pneg %p56
        %p155 = pneg %p80
        %p156 = pneg %p77
        %p157 = pneg %p106
        %p158 = pneg %p103
        %s159 = sand.u32 %s93, 1
        %s160 = scalar_lea.sflag [#allocation3], %s159
        %s161 = sand.u32 %s93, 1
        %s162 = smul.addr %s161, 64
        %s163 = scalar_lea.vmem [#allocation2], %s162
        %p164 = scmp.lt.s32.totalorder %s17, 1
        %s165 = scalar_select %p164, %s17, 1
        %s166 = smul.addr %s165, 18
        %s167 = smul.addr %s166, 4
        %s168 = scalar_lea.vmem %s0, %s167
        %s169 = smul.u32 8, %s17
        %v171 = vld [vmem:[%s168] sm:$0xf]
        %v172 = vld [vmem:[%s168 + $0x8] sm:$0xf]
        %v173 = vld [vmem:[%s168 + $0x10] sm:$0xf]
        %v174 = vld [vmem:[%s168 + $0x18] sm:$0xf]
        %v175 = vld [vmem:[%s168 + $0x20] sm:$0xf]
        %v176 = vld [vmem:[%s168 + $0x28] sm:$0xf]
        %v177 = vld [vmem:[%s168 + $0x30] sm:$0xf]
        %v178 = vld [vmem:[%s168 + $0x38] sm:$0xf]
        %v179 = vld [vmem:[%s168 + $0x4] sm:$0x1]
        %v180 = vld [vmem:[%s168 + $0xc] sm:$0x1]
        %v181 = vld [vmem:[%s168 + $0x14] sm:$0x1]
        %v182 = vld [vmem:[%s168 + $0x1c] sm:$0x1]
        %v183 = vld [vmem:[%s168 + $0x24] sm:$0x1]
        %v184 = vld [vmem:[%s168 + $0x2c] sm:$0x1]
        %v185 = vld [vmem:[%s168 + $0x34] sm:$0x1]
        %v186 = vld [vmem:[%s168 + $0x3c] sm:$0x1]
        %s187 = scalar_lea.vmem %s168, 8
        %v188 = vld [vmem:[%s187] sm:$0xf]
        %v189 = vld [vmem:[%s187 + $0x8] sm:$0xf]
        %v190 = vld [vmem:[%s187 + $0x10] sm:$0xf]
        %v191 = vld [vmem:[%s187 + $0x18] sm:$0xf]
        %v192 = vld [vmem:[%s187 + $0x20] sm:$0xf]
        %v193 = vld [vmem:[%s187 + $0x28] sm:$0xf]
        %v194 = vld [vmem:[%s187 + $0x30] sm:$0xf]
        %v195 = vld [vmem:[%s187 + $0x38] sm:$0xf]
        %v196 = vld [vmem:[%s187 + $0x4] sm:$0x1]
        %v197 = vld [vmem:[%s187 + $0xc] sm:$0x1]
        %v198 = vld [vmem:[%s187 + $0x14] sm:$0x1]
        %v199 = vld [vmem:[%s187 + $0x1c] sm:$0x1]
        %v200 = vld [vmem:[%s187 + $0x24] sm:$0x1]
        %v201 = vld [vmem:[%s187 + $0x2c] sm:$0x1]
        %v202 = vld [vmem:[%s187 + $0x34] sm:$0x1]
        %v203 = vld [vmem:[%s187 + $0x3c] sm:$0x1]
        %v204 = vld [vmem:[%s1] sm:$0xf]
        %v205 = vld [vmem:[%s1 + $0x4] sm:$0xf]
        %vm206 = vsmask.f32 3328
        %vm207 = vsmask.f32 7440
        %vm208 = vmor %vm206, %vm207
        %v210 = vshrl.u32 %v171, 16
        %v212 = vrot.slane %v210, 4
        %v213 = vshll.u32 %v171, 16
        %v215 = vrot.slane %v213, 5
        %v216 = vor.u32 %v212, %v215
        %v217 = vrot.slane %v216, 4
        %v219 = vshll.u32 %v179, 16
        %v221 = vrot.slane %v219, 5
        %v222 = vsel %vm208, %v217, %v221
        %v224 = vshrl.u32 %v172, 16
        %v226 = vrot.slane %v224, 4
        %v227 = vshll.u32 %v172, 16
        %v229 = vrot.slane %v227, 5
        %v230 = vor.u32 %v226, %v229
        %v231 = vrot.slane %v230, 4
        %v233 = vshll.u32 %v180, 16
        %v235 = vrot.slane %v233, 5
        %v236 = vsel %vm208, %v231, %v235
        %v238 = vshrl.u32 %v173, 16
        %v240 = vrot.slane %v238, 4
        %v241 = vshll.u32 %v173, 16
        %v243 = vrot.slane %v241, 5
        %v244 = vor.u32 %v240, %v243
        %v245 = vrot.slane %v244, 4
        %v247 = vshll.u32 %v181, 16
        %v249 = vrot.slane %v247, 5
        %v250 = vsel %vm208, %v245, %v249
        %v252 = vshrl.u32 %v174, 16
        %v254 = vrot.slane %v252, 4
        %v255 = vshll.u32 %v174, 16
        %v257 = vrot.slane %v255, 5
        %v258 = vor.u32 %v254, %v257
        %v259 = vrot.slane %v258, 4
        %v261 = vshll.u32 %v182, 16
        %v263 = vrot.slane %v261, 5
        %v264 = vsel %vm208, %v259, %v263
        %v266 = vshrl.u32 %v175, 16
        %v268 = vrot.slane %v266, 4
        %v269 = vshll.u32 %v175, 16
        %v271 = vrot.slane %v269, 5
        %v272 = vor.u32 %v268, %v271
        %v273 = vrot.slane %v272, 4
        %v275 = vshll.u32 %v183, 16
        %v277 = vrot.slane %v275, 5
        %v278 = vsel %vm208, %v273, %v277
        %v280 = vshrl.u32 %v176, 16
        %v282 = vrot.slane %v280, 4
        %v283 = vshll.u32 %v176, 16
        %v285 = vrot.slane %v283, 5
        %v286 = vor.u32 %v282, %v285
        %v287 = vrot.slane %v286, 4
        %v289 = vshll.u32 %v184, 16
        %v291 = vrot.slane %v289, 5
        %v292 = vsel %vm208, %v287, %v291
        %v294 = vshrl.u32 %v177, 16
        %v296 = vrot.slane %v294, 4
        %v297 = vshll.u32 %v177, 16
        %v299 = vrot.slane %v297, 5
        %v300 = vor.u32 %v296, %v299
        %v301 = vrot.slane %v300, 4
        %v303 = vshll.u32 %v185, 16
        %v305 = vrot.slane %v303, 5
        %v306 = vsel %vm208, %v301, %v305
        %v308 = vshrl.u32 %v178, 16
        %v310 = vrot.slane %v308, 4
        %v311 = vshll.u32 %v178, 16
        %v313 = vrot.slane %v311, 5
        %v314 = vor.u32 %v310, %v313
        %v315 = vrot.slane %v314, 4
        %v317 = vshll.u32 %v186, 16
        %v319 = vrot.slane %v317, 5
        %v320 = vsel %vm208, %v315, %v319
        %v321 = vld [vmem:[%s1 + $0x8] sm:$0xf]
        %v322 = vld [vmem:[%s1 + $0xc] sm:$0xf]
        %v323 = vunpack.c.l.b16 %v222
        %v324 = vunpack.c.l.b16 %v236
        %v325 = vunpack.c.l.b16 %v250
        %v326 = vunpack.c.l.b16 %v264
        %v327 = vunpack.c.l.b16 %v278
        %v328 = vunpack.c.l.b16 %v292
        %v329 = vunpack.c.l.b16 %v306
        %v330 = vunpack.c.l.b16 %v320
        %v331 = vpack.c.b16 %v324, %v323
        %v332 = vpack.c.b16 %v326, %v325
        %v333 = vpack.c.b16 %v328, %v327
        %v334 = vpack.c.b16 %v330, %v329
        %v337 = vunpack.c.l.b16 %v321
        %v338 = vunpack.c.l.b16 %v322
        %v339 = vpack.c.b16 %v338, %v337
        %vm341 = vcmask 130048
        %v343 = vsel %vm341, %v331, 0
        %v346 = vsel %vm341, %v332, 0
        %v349 = vsel %vm341, %v333, 0
        %v352 = vsel %vm341, %v334, 0
        %354 = vmatprep.subr.bf16.mxu0 0
        %355 = vmatpush1.bf16.msra.mxu0 %v339
        %356 = vmatprep.subr.bf16.mxu0 0
        %357 = vmatpush1.bf16.msra.mxu0 0
        %358 = vmatprep.subr.bf16.mxu0 0
        %359 = vmatpush1.bf16.msra.mxu0 0
        %360 = vmatprep.subr.bf16.mxu0 0
        %361 = vmatpush1.bf16.msra.mxu0 0
        %362 = vmatprep.subr.bf16.mxu0 0
        %363 = vmatpush1.bf16.msra.mxu0 0
        %364 = vmatprep.subr.bf16.mxu0 0
        %365 = vmatpush1.bf16.msra.mxu0 0
        %366 = vmatprep.subr.bf16.mxu0 0
        %367 = vmatpush1.bf16.msra.mxu0 0
        %368 = vmatprep.subr.bf16.mxu0 0
        %369 = vmatpush1.bf16.msra.mxu0 0
        %370 = vmatprep.subr.bf16.mxu0 0
        %371 = vmatpush1.bf16.msra.mxu0 0
        %372 = vmatprep.subr.bf16.mxu0 0
        %373 = vmatpush1.bf16.msra.mxu0 0
        %374 = vmatprep.subr.bf16.mxu0 0
        %375 = vmatpush1.bf16.msra.mxu0 0
        %376 = vmatprep.subr.bf16.mxu0 0
        %377 = vmatpush1.bf16.msra.mxu0 0
        %378 = vmatprep.subr.bf16.mxu0 0
        %379 = vmatpush1.bf16.msra.mxu0 0
        %380 = vmatprep.subr.bf16.mxu0 0
        %381 = vmatpush1.bf16.msra.mxu0 0
        %382 = vmatprep.subr.bf16.mxu0 0
        %383 = vmatpush1.bf16.msra.mxu0 0
        %384 = vmatprep.subr.bf16.mxu0 0
        %385 = vmatpush1.bf16.msra.mxu0 0
        %386 = vmatprep.mubr.bf16.mxu0 0
        %387 = vmatmul.mubr.bf16.gmra.mrb[0].mxu0 %v343
        %v388 = vpop.f32.mrb[0].mxu0
        %v389 = vadd.f32 0.0, %v388
        %v390 = vpop.f32.mrb[0].mxu0
        %v391 = vpop.f32.mrb[0].mxu0
        %v392 = vadd.f32 0.0, %v391
        %v393 = vpop.f32.mrb[0].mxu0
        %394 = vmatprep.mubr.bf16.mxu0 0
        %395 = vmatmul.mubr.bf16.gmra.mrb[0].mxu0 %v346
        %v396 = vpop.f32.mrb[0].mxu0
        %v397 = vadd.f32 0.0, %v396
        %v398 = vpop.f32.mrb[0].mxu0
        %v399 = vpop.f32.mrb[0].mxu0
        %v400 = vadd.f32 0.0, %v399
        %v401 = vpop.f32.mrb[0].mxu0
        %402 = vmatprep.mubr.bf16.mxu0 0
        %403 = vmatmul.mubr.bf16.gmra.mrb[0].mxu0 %v349
        %v404 = vpop.f32.mrb[0].mxu0
        %v405 = vadd.f32 0.0, %v404
        %v406 = vpop.f32.mrb[0].mxu0
        %v407 = vpop.f32.mrb[0].mxu0
        %v408 = vadd.f32 0.0, %v407
        %v409 = vpop.f32.mrb[0].mxu0
        %410 = vmatprep.mubr.bf16.mxu0 0
        %411 = vmatmul.mubr.bf16.gmra.mrb[0].mxu0 %v352
        %v412 = vpop.f32.mrb[0].mxu0
        %v413 = vadd.f32 0.0, %v412
        %v414 = vpop.f32.mrb[0].mxu0
        %v415 = vpop.f32.mrb[0].mxu0
        %v416 = vadd.f32 0.0, %v415
        %v417 = vpop.f32.mrb[0].mxu0
        %418 = vdwg.mxu0
        %v419 = vld [vmem:[%s1 + $0x10] sm:$0xf]
        %v420 = vld [vmem:[%s1 + $0x14] sm:$0xf]
        %v429 = vunpack.c.l.b16 %v188
        %v430 = vunpack.c.l.b16 %v189
        %v431 = vunpack.c.l.b16 %v190
        %v432 = vunpack.c.l.b16 %v191
        %v433 = vunpack.c.l.b16 %v192
        %v434 = vunpack.c.l.b16 %v193
        %v435 = vunpack.c.l.b16 %v194
        %v436 = vunpack.c.l.b16 %v195
        %v437 = vpack.c.b16 %v430, %v429
        %v438 = vpack.c.b16 %v432, %v431
        %v439 = vpack.c.b16 %v434, %v433
        %v440 = vpack.c.b16 %v436, %v435
        %v443 = vunpack.c.l.b16 %v419
        %v444 = vunpack.c.l.b16 %v420
        %v445 = vpack.c.b16 %v444, %v443
        %v448 = vsel %vm341, %v437, 0
        %v451 = vsel %vm341, %v438, 0
        %v454 = vsel %vm341, %v439, 0
        %v457 = vsel %vm341, %v440, 0
        %459 = vmatprep.subr.bf16.mxu0 0
        %460 = vmatpush1.bf16.msra.mxu0 %v445
        %461 = vmatprep.subr.bf16.mxu0 0
        %462 = vmatpush1.bf16.msra.mxu0 0
        %463 = vmatprep.subr.bf16.mxu0 0
        %464 = vmatpush1.bf16.msra.mxu0 0
        %465 = vmatprep.subr.bf16.mxu0 0
        %466 = vmatpush1.bf16.msra.mxu0 0
        %467 = vmatprep.subr.bf16.mxu0 0
        %468 = vmatpush1.bf16.msra.mxu0 0
        %469 = vmatprep.subr.bf16.mxu0 0
        %470 = vmatpush1.bf16.msra.mxu0 0
        %471 = vmatprep.subr.bf16.mxu0 0
        %472 = vmatpush1.bf16.msra.mxu0 0
        %473 = vmatprep.subr.bf16.mxu0 0
        %474 = vmatpush1.bf16.msra.mxu0 0
        %475 = vmatprep.subr.bf16.mxu0 0
        %476 = vmatpush1.bf16.msra.mxu0 0
        %477 = vmatprep.subr.bf16.mxu0 0
        %478 = vmatpush1.bf16.msra.mxu0 0
        %479 = vmatprep.subr.bf16.mxu0 0
        %480 = vmatpush1.bf16.msra.mxu0 0
        %481 = vmatprep.subr.bf16.mxu0 0
        %482 = vmatpush1.bf16.msra.mxu0 0
        %483 = vmatprep.subr.bf16.mxu0 0
        %484 = vmatpush1.bf16.msra.mxu0 0
        %485 = vmatprep.subr.bf16.mxu0 0
        %486 = vmatpush1.bf16.msra.mxu0 0
        %487 = vmatprep.subr.bf16.mxu0 0
        %488 = vmatpush1.bf16.msra.mxu0 0
        %489 = vmatprep.subr.bf16.mxu0 0
        %490 = vmatpush1.bf16.msra.mxu0 0
        %491 = vmatprep.mubr.bf16.mxu0 0
        %492 = vmatmul.mubr.bf16.gmra.mrb[0].mxu0 %v448
        %v493 = vpop.f32.mrb[0].mxu0
        %v494 = vadd.f32 0.0, %v493
        %v495 = vpop.f32.mrb[0].mxu0
        %v496 = vpop.f32.mrb[0].mxu0
        %v497 = vadd.f32 0.0, %v496
        %v498 = vpop.f32.mrb[0].mxu0
        %499 = vmatprep.mubr.bf16.mxu0 0
        %500 = vmatmul.mubr.bf16.gmra.mrb[0].mxu0 %v451
        %v501 = vpop.f32.mrb[0].mxu0
        %v502 = vadd.f32 0.0, %v501
        %v503 = vpop.f32.mrb[0].mxu0
        %v504 = vpop.f32.mrb[0].mxu0
        %v505 = vadd.f32 0.0, %v504
        %v506 = vpop.f32.mrb[0].mxu0
        %507 = vmatprep.mubr.bf16.mxu0 0
        %508 = vmatmul.mubr.bf16.gmra.mrb[0].mxu0 %v454
        %v509 = vpop.f32.mrb[0].mxu0
        %v510 = vadd.f32 0.0, %v509
        %v511 = vpop.f32.mrb[0].mxu0
        %v512 = vpop.f32.mrb[0].mxu0
        %v513 = vadd.f32 0.0, %v512
        %v514 = vpop.f32.mrb[0].mxu0
        %515 = vmatprep.mubr.bf16.mxu0 0
        %516 = vmatmul.mubr.bf16.gmra.mrb[0].mxu0 %v457
        %v517 = vpop.f32.mrb[0].mxu0
        %v518 = vadd.f32 0.0, %v517
        %v519 = vpop.f32.mrb[0].mxu0
        %v520 = vpop.f32.mrb[0].mxu0
        %v521 = vadd.f32 0.0, %v520
        %v522 = vpop.f32.mrb[0].mxu0
        %523 = vdwg.mxu0
        %v525 = vshrl.u32 %v188, 16
        %v527 = vrot.slane %v525, 4
        %v528 = vshll.u32 %v188, 16
        %v530 = vrot.slane %v528, 5
        %v531 = vor.u32 %v527, %v530
        %v532 = vrot.slane %v531, 4
        %v534 = vshll.u32 %v196, 16
        %v536 = vrot.slane %v534, 5
        %v537 = vsel %vm208, %v532, %v536
        %v539 = vshrl.u32 %v189, 16
        %v541 = vrot.slane %v539, 4
        %v542 = vshll.u32 %v189, 16
        %v544 = vrot.slane %v542, 5
        %v545 = vor.u32 %v541, %v544
        %v546 = vrot.slane %v545, 4
        %v548 = vshll.u32 %v197, 16
        %v550 = vrot.slane %v548, 5
        %v551 = vsel %vm208, %v546, %v550
        %v553 = vshrl.u32 %v190, 16
        %v555 = vrot.slane %v553, 4
        %v556 = vshll.u32 %v190, 16
        %v558 = vrot.slane %v556, 5
        %v559 = vor.u32 %v555, %v558
        %v560 = vrot.slane %v559, 4
        %v562 = vshll.u32 %v198, 16
        %v564 = vrot.slane %v562, 5
        %v565 = vsel %vm208, %v560, %v564
        %v567 = vshrl.u32 %v191, 16
        %v569 = vrot.slane %v567, 4
        %v570 = vshll.u32 %v191, 16
        %v572 = vrot.slane %v570, 5
        %v573 = vor.u32 %v569, %v572
        %v574 = vrot.slane %v573, 4
        %v576 = vshll.u32 %v199, 16
        %v578 = vrot.slane %v576, 5
        %v579 = vsel %vm208, %v574, %v578
        %v581 = vshrl.u32 %v192, 16
        %v583 = vrot.slane %v581, 4
        %v584 = vshll.u32 %v192, 16
        %v586 = vrot.slane %v584, 5
        %v587 = vor.u32 %v583, %v586
        %v588 = vrot.slane %v587, 4
        %v590 = vshll.u32 %v200, 16
        %v592 = vrot.slane %v590, 5
        %v593 = vsel %vm208, %v588, %v592
        %v595 = vshrl.u32 %v193, 16
        %v597 = vrot.slane %v595, 4
        %v598 = vshll.u32 %v193, 16
        %v600 = vrot.slane %v598, 5
        %v601 = vor.u32 %v597, %v600
        %v602 = vrot.slane %v601, 4
        %v604 = vshll.u32 %v201, 16
        %v606 = vrot.slane %v604, 5
        %v607 = vsel %vm208, %v602, %v606
        %v609 = vshrl.u32 %v194, 16
        %v611 = vrot.slane %v609, 4
        %v612 = vshll.u32 %v194, 16
        %v614 = vrot.slane %v612, 5
        %v615 = vor.u32 %v611, %v614
        %v616 = vrot.slane %v615, 4
        %v618 = vshll.u32 %v202, 16
        %v620 = vrot.slane %v618, 5
        %v621 = vsel %vm208, %v616, %v620
        %v623 = vshrl.u32 %v195, 16
        %v625 = vrot.slane %v623, 4
        %v626 = vshll.u32 %v195, 16
        %v628 = vrot.slane %v626, 5
        %v629 = vor.u32 %v625, %v628
        %v630 = vrot.slane %v629, 4
        %v632 = vshll.u32 %v203, 16
        %v634 = vrot.slane %v632, 5
        %v635 = vsel %vm208, %v630, %v634
        %v636 = vld [vmem:[%s1 + $0x18] sm:$0xf]
        %v637 = vld [vmem:[%s1 + $0x1c] sm:$0xf]
        %v638 = vunpack.c.l.b16 %v537
        %v639 = vunpack.c.l.b16 %v551
        %v640 = vunpack.c.l.b16 %v565
        %v641 = vunpack.c.l.b16 %v579
        %v642 = vunpack.c.l.b16 %v593
        %v643 = vunpack.c.l.b16 %v607
        %v644 = vunpack.c.l.b16 %v621
        %v645 = vunpack.c.l.b16 %v635
        %v646 = vpack.c.b16 %v639, %v638
        %v647 = vpack.c.b16 %v641, %v640
        %v648 = vpack.c.b16 %v643, %v642
        %v649 = vpack.c.b16 %v645, %v644
        %v652 = vunpack.c.l.b16 %v636
        %v653 = vunpack.c.l.b16 %v637
        %v654 = vpack.c.b16 %v653, %v652
        %v657 = vsel %vm341, %v646, 0
        %v660 = vsel %vm341, %v647, 0
        %v663 = vsel %vm341, %v648, 0
        %v666 = vsel %vm341, %v649, 0
        %668 = vmatprep.subr.bf16.mxu0 0
        %669 = vmatpush1.bf16.msra.mxu0 %v654
        %670 = vmatprep.subr.bf16.mxu0 0
        %671 = vmatpush1.bf16.msra.mxu0 0
        %672 = vmatprep.subr.bf16.mxu0 0
        %673 = vmatpush1.bf16.msra.mxu0 0
        %674 = vmatprep.subr.bf16.mxu0 0
        %675 = vmatpush1.bf16.msra.mxu0 0
        %676 = vmatprep.subr.bf16.mxu0 0
        %677 = vmatpush1.bf16.msra.mxu0 0
        %678 = vmatprep.subr.bf16.mxu0 0
        %679 = vmatpush1.bf16.msra.mxu0 0
        %680 = vmatprep.subr.bf16.mxu0 0
        %681 = vmatpush1.bf16.msra.mxu0 0
        %682 = vmatprep.subr.bf16.mxu0 0
        %683 = vmatpush1.bf16.msra.mxu0 0
        %684 = vmatprep.subr.bf16.mxu0 0
        %685 = vmatpush1.bf16.msra.mxu0 0
        %686 = vmatprep.subr.bf16.mxu0 0
        %687 = vmatpush1.bf16.msra.mxu0 0
        %688 = vmatprep.subr.bf16.mxu0 0
        %689 = vmatpush1.bf16.msra.mxu0 0
        %690 = vmatprep.subr.bf16.mxu0 0
        %691 = vmatpush1.bf16.msra.mxu0 0
        %692 = vmatprep.subr.bf16.mxu0 0
        %693 = vmatpush1.bf16.msra.mxu0 0
        %694 = vmatprep.subr.bf16.mxu0 0
        %695 = vmatpush1.bf16.msra.mxu0 0
        %696 = vmatprep.subr.bf16.mxu0 0
        %697 = vmatpush1.bf16.msra.mxu0 0
        %698 = vmatprep.subr.bf16.mxu0 0
        %699 = vmatpush1.bf16.msra.mxu0 0
        %700 = vmatprep.mubr.bf16.mxu0 0
        %701 = vmatmul.mubr.bf16.gmra.mrb[0].mxu0 %v657
        %v702 = vpop.f32.mrb[0].mxu0
        %v703 = vadd.f32 0.0, %v702
        %v704 = vpop.f32.mrb[0].mxu0
        %v705 = vpop.f32.mrb[0].mxu0
        %v706 = vadd.f32 0.0, %v705
        %v707 = vpop.f32.mrb[0].mxu0
        %708 = vmatprep.mubr.bf16.mxu0 0
        %709 = vmatmul.mubr.bf16.gmra.mrb[0].mxu0 %v660
        %v710 = vpop.f32.mrb[0].mxu0
        %v711 = vadd.f32 0.0, %v710
        %v712 = vpop.f32.mrb[0].mxu0
        %v713 = vpop.f32.mrb[0].mxu0
        %v714 = vadd.f32 0.0, %v713
        %v715 = vpop.f32.mrb[0].mxu0
        %716 = vmatprep.mubr.bf16.mxu0 0
        %717 = vmatmul.mubr.bf16.gmra.mrb[0].mxu0 %v663
        %v718 = vpop.f32.mrb[0].mxu0
        %v719 = vadd.f32 0.0, %v718
        %v720 = vpop.f32.mrb[0].mxu0
        %v721 = vpop.f32.mrb[0].mxu0
        %v722 = vadd.f32 0.0, %v721
        %v723 = vpop.f32.mrb[0].mxu0
        %724 = vmatprep.mubr.bf16.mxu0 0
        %725 = vmatmul.mubr.bf16.gmra.mrb[0].mxu0 %v666
        %v726 = vpop.f32.mrb[0].mxu0
        %v727 = vadd.f32 0.0, %v726
        %v728 = vpop.f32.mrb[0].mxu0
        %v729 = vpop.f32.mrb[0].mxu0
        %v730 = vadd.f32 0.0, %v729
        %v731 = vpop.f32.mrb[0].mxu0
        %732 = vdwg.mxu0
        %v741 = vunpack.c.l.b16 %v171
        %v742 = vunpack.c.l.b16 %v172
        %v743 = vunpack.c.l.b16 %v173
        %v744 = vunpack.c.l.b16 %v174
        %v745 = vunpack.c.l.b16 %v175
        %v746 = vunpack.c.l.b16 %v176
        %v747 = vunpack.c.l.b16 %v177
        %v748 = vunpack.c.l.b16 %v178
        %v749 = vpack.c.b16 %v742, %v741
        %v750 = vpack.c.b16 %v744, %v743
        %v751 = vpack.c.b16 %v746, %v745
        %v752 = vpack.c.b16 %v748, %v747
        %v755 = vunpack.c.l.b16 %v204
        %v756 = vunpack.c.l.b16 %v205
        %v757 = vpack.c.b16 %v756, %v755
        %v760 = vsel %vm341, %v749, 0
        %v763 = vsel %vm341, %v750, 0
        %v766 = vsel %vm341, %v751, 0
        %v769 = vsel %vm341, %v752, 0
        %771 = vmatprep.subr.bf16.mxu0 0
        %772 = vmatpush1.bf16.msra.mxu0 %v757
        %773 = vmatprep.subr.bf16.mxu0 0
        %774 = vmatpush1.bf16.msra.mxu0 0
        %775 = vmatprep.subr.bf16.mxu0 0
        %776 = vmatpush1.bf16.msra.mxu0 0
        %777 = vmatprep.subr.bf16.mxu0 0
        %778 = vmatpush1.bf16.msra.mxu0 0
        %779 = vmatprep.subr.bf16.mxu0 0
        %780 = vmatpush1.bf16.msra.mxu0 0
        %781 = vmatprep.subr.bf16.mxu0 0
        %782 = vmatpush1.bf16.msra.mxu0 0
        %783 = vmatprep.subr.bf16.mxu0 0
        %784 = vmatpush1.bf16.msra.mxu0 0
        %785 = vmatprep.subr.bf16.mxu0 0
        %786 = vmatpush1.bf16.msra.mxu0 0
        %787 = vmatprep.subr.bf16.mxu0 0
        %788 = vmatpush1.bf16.msra.mxu0 0
        %789 = vmatprep.subr.bf16.mxu0 0
        %790 = vmatpush1.bf16.msra.mxu0 0
        %791 = vmatprep.subr.bf16.mxu0 0
        %792 = vmatpush1.bf16.msra.mxu0 0
        %793 = vmatprep.subr.bf16.mxu0 0
        %794 = vmatpush1.bf16.msra.mxu0 0
        %795 = vmatprep.subr.bf16.mxu0 0
        %796 = vmatpush1.bf16.msra.mxu0 0
        %797 = vmatprep.subr.bf16.mxu0 0
        %798 = vmatpush1.bf16.msra.mxu0 0
        %799 = vmatprep.subr.bf16.mxu0 0
        %800 = vmatpush1.bf16.msra.mxu0 0
        %801 = vmatprep.subr.bf16.mxu0 0
        %802 = vmatpush1.bf16.msra.mxu0 0
        %803 = vmatprep.mubr.bf16.mxu0 0
        %804 = vmatmul.mubr.bf16.gmra.mrb[0].mxu0 %v760
        %v805 = vpop.f32.mrb[0].mxu0
        %v806 = vadd.f32 %v389, %v805
        %v807 = vpop.f32.mrb[0].mxu0
        %v808 = vpop.f32.mrb[0].mxu0
        %v809 = vadd.f32 %v392, %v808
        %v810 = vpop.f32.mrb[0].mxu0
        %811 = vmatprep.mubr.bf16.mxu0 0
        %812 = vmatmul.mubr.bf16.gmra.mrb[0].mxu0 %v763
        %v813 = vpop.f32.mrb[0].mxu0
        %v814 = vadd.f32 %v397, %v813
        %v815 = vpop.f32.mrb[0].mxu0
        %v816 = vpop.f32.mrb[0].mxu0
        %v817 = vadd.f32 %v400, %v816
        %v818 = vpop.f32.mrb[0].mxu0
        %819 = vmatprep.mubr.bf16.mxu0 0
        %820 = vmatmul.mubr.bf16.gmra.mrb[0].mxu0 %v766
        %v821 = vpop.f32.mrb[0].mxu0
        %v822 = vadd.f32 %v405, %v821
        %v823 = vpop.f32.mrb[0].mxu0
        %v824 = vpop.f32.mrb[0].mxu0
        %v825 = vadd.f32 %v408, %v824
        %v826 = vpop.f32.mrb[0].mxu0
        %827 = vmatprep.mubr.bf16.mxu0 0
        %828 = vmatmul.mubr.bf16.gmra.mrb[0].mxu0 %v769
        %v829 = vpop.f32.mrb[0].mxu0
        %v830 = vadd.f32 %v413, %v829
        %v831 = vpop.f32.mrb[0].mxu0
        %v832 = vpop.f32.mrb[0].mxu0
        %v833 = vadd.f32 %v416, %v832
        %v834 = vpop.f32.mrb[0].mxu0
        %835 = vdwg.mxu0
        %v836 = vadd.f32 %v806, %v494
        %v837 = vadd.f32 %v809, %v497
        %v838 = vadd.f32 %v814, %v502
        %v839 = vadd.f32 %v817, %v505
        %v840 = vadd.f32 %v822, %v510
        %v841 = vadd.f32 %v825, %v513
        %v842 = vadd.f32 %v830, %v518
        %v843 = vadd.f32 %v833, %v521
        %v844 = vadd.f32 %v836, %v703
        %v845 = vadd.f32 %v837, %v706
        %v846 = vadd.f32 %v838, %v711
        %v847 = vadd.f32 %v839, %v714
        %v848 = vadd.f32 %v840, %v719
        %v849 = vadd.f32 %v841, %v722
        %v850 = vadd.f32 %v842, %v727
        %v851 = vadd.f32 %v843, %v730
        %v852 = vld [vmem:[%s2] sm:$0x1]
        %v854 = vlaneseq
        %v855 = vshrl.u32 %v854, 7
        %v856 = vsub.s32 0, %v855
        %v857 = vrot.slane %v852, %v856
        %v859 = vadd.f32 %v844, %v857
        %v860 = vadd.f32 %v845, %v857
        %v861 = vadd.f32 %v846, %v857
        %v862 = vadd.f32 %v847, %v857
        %v863 = vadd.f32 %v848, %v857
        %v864 = vadd.f32 %v849, %v857
        %v865 = vadd.f32 %v850, %v857
        %v866 = vadd.f32 %v851, %v857
        %867 = vst [vmem:[%s163] sm:$0xff] %v859
        %868 = vst [vmem:[%s163 + $0x8] sm:$0xff] %v860
        %869 = vst [vmem:[%s163 + $0x10] sm:$0xff] %v861
        %870 = vst [vmem:[%s163 + $0x18] sm:$0xff] %v862
        %871 = vst [vmem:[%s163 + $0x20] sm:$0xff] %v863
        %872 = vst [vmem:[%s163 + $0x28] sm:$0xff] %v864
        %873 = vst [vmem:[%s163 + $0x30] sm:$0xff] %v865
        %874 = vst [vmem:[%s163 + $0x38] sm:$0xff] %v866
        %s875 = sand.u32 %s93, 1
        %s876 = scalar_lea.sflag [#allocation3], %s875
        %s877 = sand.u32 %s93, 1
        %s878 = smul.addr %s877, 64
        %s879 = scalar_lea.vmem [#allocation2], %s878
        // Predicated region
        $region33: #{tpu_custom_call.1} parent=31 // pred_check
          %p880 = pneg %p103
        $region34: #{tpu_custom_call.1} parent=31 // pred_check_branch
          %882 = sbr.rel (%p880) target = $region36
        $region35: #{tpu_custom_call.1} parent=31 // pred_region
          %s883 = smul.u32 8, %s17
          %s885 = ssub.s32 1024, 1024
          %886 = vsyncadd %s876, %s885
          %s887 = smul.addr %s883, 128
          %s888 = scalar_lea.hbm %s3, %s887
          %s889 = sshll.u32 %s879, 4
          %s890 = int_to_ptr.vmem [resolvable:$true] %s889
          %895 = dma.vmem_to_hbm [thread:$0]  %s890, 1024, %s888, %s876, 128, 128, 8
        $region36: #{tpu_custom_call.1} parent=31 // pred_fallthru
          _
      $region32: #{tpu_custom_call.1} parent=5 // pred_fallthru
        _
      %p896 = scmp.le.s32.totalorder 2, %s12
      // Predicated region
      $region37: #{tpu_custom_call.1} parent=5 // pred_check
        %p897 = pneg %p896
      $region38: #{tpu_custom_call.1} parent=5 // pred_check_branch
        %899 = sbr.rel (%p897) target = $region40
      $region39: #{tpu_custom_call.1} parent=5 // pred_region
        %s900 = ssub.s32 %s12, 2
        // Predicated region
        $region41: #{tpu_custom_call.1} parent=39 // pred_check
          %p901 = pneg %p109
        $region42: #{tpu_custom_call.1} parent=39 // pred_check_branch
          %903 = sbr.rel (%p901) target = $region44
        $region43: #{tpu_custom_call.1} parent=39 // pred_region
          %s904 = sand.u32 %s94, 1
          %s905 = scalar_lea.sflag [#allocation3], %s904
          %s906 = sand.u32 %s94, 1
          %s907 = smul.addr %s906, 64
          %s908 = scalar_lea.vmem [#allocation2], %s907
          %909 = dma.done %s905, 1024
        $region44: #{tpu_custom_call.1} parent=39 // pred_fallthru
          _
      $region40: #{tpu_custom_call.1} parent=5 // pred_fallthru
        _
    $region6: #{tpu_custom_call.1} parent=1 // loop_footer
      %s16 = sadd.s32 1, %s12
    $region7: #{tpu_custom_call.1} parent=1 // loop_footer_branch
      %11 = sbr.rel target = $region3
    $region8: #{tpu_custom_call.1} parent=1 // loop_exit
      _
    %910 = vsyncpa [#allocation3], 1
    %s911 = scalar_lea.sflag [#allocation3], 1
    %912 = vsyncpa %s911, 1

</llo_original>
